<compile_context>
chip_gen: v6e
topology: v6e:2x2x1
jax: 0.10.0
libtpu: 0.0.40
codegen_flags: <defaults>
</compile_context>

<pallas_src>
import jax
import jax.numpy as jnp
from jax import lax
from jax.experimental import pallas as pl
from jax.experimental.pallas import tpu as pltpu

LANES = 128          # lane width of a vreg
SUBLANES = 8         # sublane height of a f32 vreg
GROUP = SUBLANES * LANES   # 1024 rows = one full (8,128) vreg worth of batch


def _round_up(x, m):
    return (x + m - 1) // m * m


def _cdiv(a, b):
    return (a + b - 1) // b


def _make_kernel(layer_dims, chunk):
    """Build the fused QMLP kernel for a static list of layer dims.

    `chunk` is the number of sublanes processed per inner-loop iteration
    (a multiple of 8 that divides the tile's sublane count)."""
    layer_dims = tuple(layer_dims)
    n_layers = len(layer_dims) - 1
    out_dim = layer_dims[-1]

    # Static offsets of every parameter inside the packed f32 block.
    offsets = []
    off = 0
    for layer in range(n_layers):
        fin, fout = layer_dims[layer], layer_dims[layer + 1]
        entry = {}
        for name in ("wr", "br", "wg", "bg", "wb", "bb"):
            entry[name] = off
            off += fin * fout if name.startswith("w") else fout
        offsets.append(entry)
    n_params = off

    def kernel(p_ref, x_ref, o_ref):
        # x_ref: (F, sub, 128) f32  -- batch on (sublane, lane), features leading.
        sub = x_ref.shape[1]
        n_chunks = sub // chunk

        def chunk_body(c, carry):
            base = c * chunk
            if not isinstance(base, int):
                base = pl.multiple_of(base, chunk)

            # Per-feature, per-chunk loads straight from the ref (aligned,
            # full-width); the whole chain below lives in registers.
            h = [x_ref[k, pl.ds(base, chunk), :] for k in range(layer_dims[0])]

            for layer in range(n_layers):
                fin, fout = layer_dims[layer], layer_dims[layer + 1]
                o = offsets[layer]
                h_sq = [hk * hk for hk in h]
                new_h = []
                for j in range(fout):
                    # w[k, j] lives at base + k*fout + j  (row-major (in,out)).
                    acc_r = h[0] * p_ref[o["wr"] + j]
                    acc_g = h[0] * p_ref[o["wg"] + j]
                    acc_b = h_sq[0] * p_ref[o["wb"] + j]
                    for k in range(1, fin):
                        acc_r += h[k] * p_ref[o["wr"] + k * fout + j]
                        acc_g += h[k] * p_ref[o["wg"] + k * fout + j]
                        acc_b += h_sq[k] * p_ref[o["wb"] + k * fout + j]
                    acc_r += p_ref[o["br"] + j]
                    acc_g += p_ref[o["bg"] + j]
                    acc_b += p_ref[o["bb"] + j]
                    y = acc_r * acc_g + acc_b                 # quadratic neuron
                    if layer + 1 != n_layers:                 # ReLU between layers only
                        y = jnp.maximum(y, 0.0)
                    new_h.append(y)
                h = new_h

            if out_dim == 2:
                # softmax over 2 classes == sigmoid of the logit difference.
                d = jnp.minimum(h[1] - h[0], 80.0)            # keep exp finite
                s = 1.0 + jnp.exp(d)                          # EUP slot
                inv = pl.reciprocal(s, approx=True)           # EUP slot
                p0 = inv * (2.0 - s * inv)                    # Newton -> ~f32 exact
                outs = [p0, 1.0 - p0]
            else:
                # Numerically stable softmax over the tiny feature axis,
                # fully unrolled (no cross-lane/cross-sublane reductions).
                m = h[0]
                for r in h[1:]:
                    m = jnp.maximum(m, r)
                e = [jnp.exp(r - m) for r in h]
                s = e[0]
                for r in e[1:]:
                    s = s + r
                inv = pl.reciprocal(s, approx=True)
                inv = inv * (2.0 - s * inv)
                outs = [ej * inv for ej in e]

            for j in range(out_dim):
                o_ref[j, pl.ds(base, chunk), :] = outs[j].astype(o_ref.dtype)
            return carry

        if n_chunks == 1:
            chunk_body(0, 0)
        else:
            lax.fori_loop(0, n_chunks, chunk_body, 0, unroll=2)

    return kernel, n_params


def _pick_chunk(sub, preferred=32):
    """Largest of {preferred, 16, 8} (sublanes) that divides `sub`."""
    for cand in (preferred, 16, 8):
        if cand <= sub and sub % cand == 0:
            return cand
    return SUBLANES


def qmlp_forward(x, params, layer_dims, *, max_tile_rows=65536, chunk_sublanes=32):
    """x: (N, F).  params: flat list [Wr, br, Wg, bg, Wb, bb] * n_layers with
    weights in (in, out) layout and biases 1-D (out,).  Returns (N, out_dim)."""
    layer_dims = tuple(layer_dims)
    n, f = x.shape
    assert f == layer_dims[0]
    out_dim = layer_dims[-1]

    packed = jnp.concatenate(
        [jnp.asarray(p, jnp.float32).reshape(-1) for p in params])

    # ---- divisor-aware batch tiling -------------------------------------
    # Force the tile quantum to a multiple of 1024 rows (8 sublanes x 128
    # lanes) so the (8,128) constraint always holds, even for odd callers.
    max_tile_rows = max(GROUP, _round_up(max_tile_rows, GROUP))
    groups = max(_cdiv(n, GROUP), 1)
    max_groups_per_tile = max_tile_rows // GROUP
    # At least 4 grid steps (when the batch allows) so both v7x TensorCores
    # get balanced work; no effect on v5e/v6e (single TC).
    min_tiles = min(groups, 4)
    num_tiles = max(_cdiv(groups, max_groups_per_tile), min_tiles)
    groups_per_tile = _cdiv(groups, num_tiles)
    num_tiles = _cdiv(groups, groups_per_tile)
    tile_rows = groups_per_tile * GROUP
    n_pad = num_tiles * tile_rows          # padding bounded by ~one tile
    sub = tile_rows // LANES               # sublanes per tile (multiple of 8)
    chunk = _pick_chunk(sub, chunk_sublanes)

    kernel, n_params = _make_kernel(layer_dims, chunk)
    assert packed.shape[0] == n_params

    # Lane-dense layout: (F, n_pad/128, 128); element [f, i, j] = x[i*128 + j, f].
    xt = jnp.pad(x.T.astype(jnp.float32), ((0, 0), (0, n_pad - n)))
    xt = xt.reshape(f, n_pad // LANES, LANES)

    grid = (num_tiles,)
    out = pl.pallas_call(
        kernel,
        out_shape=jax.ShapeDtypeStruct((out_dim, n_pad // LANES, LANES), jnp.float32),
        grid=grid,
        in_specs=[
            # Packed params: one small block, resident in SMEM for the whole call.
            pl.BlockSpec(memory_space=pltpu.MemorySpace.SMEM),
            # Streaming, double-buffered batch tiles.
            pl.BlockSpec((f, sub, LANES), lambda i: (0, i, 0)),
        ],
        out_specs=pl.BlockSpec((out_dim, sub, LANES), lambda i: (0, i, 0)),
        compiler_params=pltpu.CompilerParams(
            dimension_semantics=("parallel",),        # shard batch tiles across TCs
            vmem_limit_bytes=32 * 1024 * 1024,        # tiles use only a few MiB
        ),
    )(packed, xt)

    return out.reshape(out_dim, n_pad)[:, :n].T


def init_params(key, layer_dims):
    """Deterministic init: per layer (Wr, br, Wg, bg, Wb, bb); W in (in,out)."""
    params = []
    for layer in range(len(layer_dims) - 1):
        fan_in, fan_out = layer_dims[layer], layer_dims[layer + 1]
        bound = 1.0 / float(fan_in) ** 0.5
        for _ in range(3):  # r, g, b branches
            key, kw, kb = jax.random.split(key, 3)
            w = jax.random.uniform(kw, (fan_in, fan_out), jnp.float32, -bound, bound)
            b = jax.random.uniform(kb, (fan_out,), jnp.float32, -bound, bound)
            params.extend([w, b])
    return params


def qmlp_reference(x, params, layer_dims):
    """Pure-JAX reference (mirrors the PyTorch QMLP forward)."""
    h = x.astype(jnp.float32)
    n_layers = len(layer_dims) - 1
    for layer in range(n_layers):
        wr, br, wg, bg, wb, bb = params[6 * layer: 6 * (layer + 1)]
        h = (h @ wr + br) * (h @ wg + bg) + (h * h) @ wb + bb
        if layer + 1 != n_layers:
            h = jnp.maximum(h, 0.0)
    return jax.nn.softmax(h, axis=1)


if __name__ == "__main__":
    n_features = 4
    hidden_neurons = [2, 4, 4, 2]
    layer_dims = [n_features, *hidden_neurons]

    key = jax.random.PRNGKey(0)
    key, kx = jax.random.split(key)
    params = init_params(key, layer_dims)

    # Small primary check (single grid step, single chunk).
    x = jax.random.normal(kx, (8, n_features), dtype=jnp.float32)
    out = jax.block_until_ready(qmlp_forward(x, params, layer_dims))
    ref = qmlp_reference(x, params, layer_dims)
    assert out.shape == (8, hidden_neurons[-1])
    assert jnp.allclose(out, ref, atol=1e-4, rtol=1e-4), "mismatch vs JAX reference"
    assert jnp.allclose(jnp.sum(out, axis=1), 1.0, atol=1e-4)

    # Multi-tile path: 2 grid steps + batch padding (1500 rows, 1024-row tiles).
    key, kx2 = jax.random.split(key)
    x2 = jax.random.normal(kx2, (1500, n_features), dtype=jnp.float32)
    out2 = jax.block_until_ready(
        qmlp_forward(x2, params, layer_dims, max_tile_rows=1024))
    ref2 = qmlp_reference(x2, params, layer_dims)
    assert out2.shape == (1500, hidden_neurons[-1])
    assert jnp.allclose(out2, ref2, atol=1e-4, rtol=1e-4), "multi-tile mismatch"

    # Multi-chunk path: default tiling -> 4 grid steps, 3 inner chunks per tile.
    key, kx3 = jax.random.split(key)
    x3 = jax.random.normal(kx3, (10000, n_features), dtype=jnp.float32)
    out3 = jax.block_until_ready(qmlp_forward(x3, params, layer_dims))
    ref3 = qmlp_reference(x3, params, layer_dims)
    assert out3.shape == (10000, hidden_neurons[-1])
    assert jnp.allclose(out3, ref3, atol=1e-4, rtol=1e-4), "multi-chunk mismatch"

    print("KERNEL_OK")
</pallas_src>

<mosaic_0001>
module attributes {stable_mosaic.version = 11 : i64} {
  func.func @kernel(%arg0: i32, %arg1: memref<156xf32, #tpu.memory_space<smem>>, %arg2: memref<4x8x128xf32, #tpu.memory_space<vmem>>, %arg3: memref<2x8x128xf32, #tpu.memory_space<vmem>>) attributes {dimension_semantics = [#tpu.dimension_semantics<parallel>], iteration_bounds = array<i64: 1>, scalar_prefetch = 0 : i64, scratch_operands = 0 : i64, tpu.core_type = #tpu.core_type<tc>, window_params = [{transform_indices = @transform_0, window_bounds = array<i64: 156>}, {transform_indices = @transform_1, window_bounds = array<i64: 4, 8, 128>}, {transform_indices = @transform_2, window_bounds = array<i64: 2, 8, 128>}]} {
    %c0 = arith.constant 0 : index
    %c0_0 = arith.constant 0 : index
    %c0_1 = arith.constant 0 : index
    %0 = vector.load %arg2[%c0, %c0_0, %c0_1] : memref<4x8x128xf32, #tpu.memory_space<vmem>>, vector<1x8x128xf32>
    %1 = vector.shape_cast %0 : vector<1x8x128xf32> to vector<8x128xf32>
    %c1 = arith.constant 1 : index
    %c0_2 = arith.constant 0 : index
    %c0_3 = arith.constant 0 : index
    %2 = vector.load %arg2[%c1, %c0_2, %c0_3] : memref<4x8x128xf32, #tpu.memory_space<vmem>>, vector<1x8x128xf32>
    %3 = vector.shape_cast %2 : vector<1x8x128xf32> to vector<8x128xf32>
    %c2 = arith.constant 2 : index
    %c0_4 = arith.constant 0 : index
    %c0_5 = arith.constant 0 : index
    %4 = vector.load %arg2[%c2, %c0_4, %c0_5] : memref<4x8x128xf32, #tpu.memory_space<vmem>>, vector<1x8x128xf32>
    %5 = vector.shape_cast %4 : vector<1x8x128xf32> to vector<8x128xf32>
    %c3 = arith.constant 3 : index
    %c0_6 = arith.constant 0 : index
    %c0_7 = arith.constant 0 : index
    %6 = vector.load %arg2[%c3, %c0_6, %c0_7] : memref<4x8x128xf32, #tpu.memory_space<vmem>>, vector<1x8x128xf32>
    %7 = vector.shape_cast %6 : vector<1x8x128xf32> to vector<8x128xf32>
    %8 = arith.mulf %1, %1 : vector<8x128xf32>
    %9 = arith.mulf %3, %3 : vector<8x128xf32>
    %10 = arith.mulf %5, %5 : vector<8x128xf32>
    %11 = arith.mulf %7, %7 : vector<8x128xf32>
    %c0_8 = arith.constant 0 : index
    %12 = memref.load %arg1[%c0_8] : memref<156xf32, #tpu.memory_space<smem>>
    %13 = vector.broadcast %12 : f32 to vector<8x128xf32>
    %14 = arith.mulf %1, %13 : vector<8x128xf32>
    %c10 = arith.constant 10 : index
    %15 = memref.load %arg1[%c10] : memref<156xf32, #tpu.memory_space<smem>>
    %16 = vector.broadcast %15 : f32 to vector<8x128xf32>
    %17 = arith.mulf %1, %16 : vector<8x128xf32>
    %c20 = arith.constant 20 : index
    %18 = memref.load %arg1[%c20] : memref<156xf32, #tpu.memory_space<smem>>
    %19 = vector.broadcast %18 : f32 to vector<8x128xf32>
    %20 = arith.mulf %8, %19 : vector<8x128xf32>
    %c2_9 = arith.constant 2 : index
    %21 = memref.load %arg1[%c2_9] : memref<156xf32, #tpu.memory_space<smem>>
    %22 = vector.broadcast %21 : f32 to vector<8x128xf32>
    %23 = arith.mulf %3, %22 : vector<8x128xf32>
    %24 = arith.addf %14, %23 : vector<8x128xf32>
    %c12 = arith.constant 12 : index
    %25 = memref.load %arg1[%c12] : memref<156xf32, #tpu.memory_space<smem>>
    %26 = vector.broadcast %25 : f32 to vector<8x128xf32>
    %27 = arith.mulf %3, %26 : vector<8x128xf32>
    %28 = arith.addf %17, %27 : vector<8x128xf32>
    %c22 = arith.constant 22 : index
    %29 = memref.load %arg1[%c22] : memref<156xf32, #tpu.memory_space<smem>>
    %30 = vector.broadcast %29 : f32 to vector<8x128xf32>
    %31 = arith.mulf %9, %30 : vector<8x128xf32>
    %32 = arith.addf %20, %31 : vector<8x128xf32>
    %c4 = arith.constant 4 : index
    %33 = memref.load %arg1[%c4] : memref<156xf32, #tpu.memory_space<smem>>
    %34 = vector.broadcast %33 : f32 to vector<8x128xf32>
    %35 = arith.mulf %5, %34 : vector<8x128xf32>
    %36 = arith.addf %24, %35 : vector<8x128xf32>
    %c14 = arith.constant 14 : index
    %37 = memref.load %arg1[%c14] : memref<156xf32, #tpu.memory_space<smem>>
    %38 = vector.broadcast %37 : f32 to vector<8x128xf32>
    %39 = arith.mulf %5, %38 : vector<8x128xf32>
    %40 = arith.addf %28, %39 : vector<8x128xf32>
    %c24 = arith.constant 24 : index
    %41 = memref.load %arg1[%c24] : memref<156xf32, #tpu.memory_space<smem>>
    %42 = vector.broadcast %41 : f32 to vector<8x128xf32>
    %43 = arith.mulf %10, %42 : vector<8x128xf32>
    %44 = arith.addf %32, %43 : vector<8x128xf32>
    %c6 = arith.constant 6 : index
    %45 = memref.load %arg1[%c6] : memref<156xf32, #tpu.memory_space<smem>>
    %46 = vector.broadcast %45 : f32 to vector<8x128xf32>
    %47 = arith.mulf %7, %46 : vector<8x128xf32>
    %48 = arith.addf %36, %47 : vector<8x128xf32>
    %c16 = arith.constant 16 : index
    %49 = memref.load %arg1[%c16] : memref<156xf32, #tpu.memory_space<smem>>
    %50 = vector.broadcast %49 : f32 to vector<8x128xf32>
    %51 = arith.mulf %7, %50 : vector<8x128xf32>
    %52 = arith.addf %40, %51 : vector<8x128xf32>
    %c26 = arith.constant 26 : index
    %53 = memref.load %arg1[%c26] : memref<156xf32, #tpu.memory_space<smem>>
    %54 = vector.broadcast %53 : f32 to vector<8x128xf32>
    %55 = arith.mulf %11, %54 : vector<8x128xf32>
    %56 = arith.addf %44, %55 : vector<8x128xf32>
    %c8 = arith.constant 8 : index
    %57 = memref.load %arg1[%c8] : memref<156xf32, #tpu.memory_space<smem>>
    %58 = vector.broadcast %57 : f32 to vector<8x128xf32>
    %59 = arith.addf %48, %58 : vector<8x128xf32>
    %c18 = arith.constant 18 : index
    %60 = memref.load %arg1[%c18] : memref<156xf32, #tpu.memory_space<smem>>
    %61 = vector.broadcast %60 : f32 to vector<8x128xf32>
    %62 = arith.addf %52, %61 : vector<8x128xf32>
    %c28 = arith.constant 28 : index
    %63 = memref.load %arg1[%c28] : memref<156xf32, #tpu.memory_space<smem>>
    %64 = vector.broadcast %63 : f32 to vector<8x128xf32>
    %65 = arith.addf %56, %64 : vector<8x128xf32>
    %66 = arith.mulf %59, %62 : vector<8x128xf32>
    %67 = arith.addf %66, %65 : vector<8x128xf32>
    %cst = arith.constant 0.000000e+00 : f32
    %68 = vector.broadcast %cst : f32 to vector<8x128xf32>
    %69 = arith.maximumf %67, %68 : vector<8x128xf32>
    %c1_10 = arith.constant 1 : index
    %70 = memref.load %arg1[%c1_10] : memref<156xf32, #tpu.memory_space<smem>>
    %71 = vector.broadcast %70 : f32 to vector<8x128xf32>
    %72 = arith.mulf %1, %71 : vector<8x128xf32>
    %c11 = arith.constant 11 : index
    %73 = memref.load %arg1[%c11] : memref<156xf32, #tpu.memory_space<smem>>
    %74 = vector.broadcast %73 : f32 to vector<8x128xf32>
    %75 = arith.mulf %1, %74 : vector<8x128xf32>
    %c21 = arith.constant 21 : index
    %76 = memref.load %arg1[%c21] : memref<156xf32, #tpu.memory_space<smem>>
    %77 = vector.broadcast %76 : f32 to vector<8x128xf32>
    %78 = arith.mulf %8, %77 : vector<8x128xf32>
    %c3_11 = arith.constant 3 : index
    %79 = memref.load %arg1[%c3_11] : memref<156xf32, #tpu.memory_space<smem>>
    %80 = vector.broadcast %79 : f32 to vector<8x128xf32>
    %81 = arith.mulf %3, %80 : vector<8x128xf32>
    %82 = arith.addf %72, %81 : vector<8x128xf32>
    %c13 = arith.constant 13 : index
    %83 = memref.load %arg1[%c13] : memref<156xf32, #tpu.memory_space<smem>>
    %84 = vector.broadcast %83 : f32 to vector<8x128xf32>
    %85 = arith.mulf %3, %84 : vector<8x128xf32>
    %86 = arith.addf %75, %85 : vector<8x128xf32>
    %c23 = arith.constant 23 : index
    %87 = memref.load %arg1[%c23] : memref<156xf32, #tpu.memory_space<smem>>
    %88 = vector.broadcast %87 : f32 to vector<8x128xf32>
    %89 = arith.mulf %9, %88 : vector<8x128xf32>
    %90 = arith.addf %78, %89 : vector<8x128xf32>
    %c5 = arith.constant 5 : index
    %91 = memref.load %arg1[%c5] : memref<156xf32, #tpu.memory_space<smem>>
    %92 = vector.broadcast %91 : f32 to vector<8x128xf32>
    %93 = arith.mulf %5, %92 : vector<8x128xf32>
    %94 = arith.addf %82, %93 : vector<8x128xf32>
    %c15 = arith.constant 15 : index
    %95 = memref.load %arg1[%c15] : memref<156xf32, #tpu.memory_space<smem>>
    %96 = vector.broadcast %95 : f32 to vector<8x128xf32>
    %97 = arith.mulf %5, %96 : vector<8x128xf32>
    %98 = arith.addf %86, %97 : vector<8x128xf32>
    %c25 = arith.constant 25 : index
    %99 = memref.load %arg1[%c25] : memref<156xf32, #tpu.memory_space<smem>>
    %100 = vector.broadcast %99 : f32 to vector<8x128xf32>
    %101 = arith.mulf %10, %100 : vector<8x128xf32>
    %102 = arith.addf %90, %101 : vector<8x128xf32>
    %c7 = arith.constant 7 : index
    %103 = memref.load %arg1[%c7] : memref<156xf32, #tpu.memory_space<smem>>
    %104 = vector.broadcast %103 : f32 to vector<8x128xf32>
    %105 = arith.mulf %7, %104 : vector<8x128xf32>
    %106 = arith.addf %94, %105 : vector<8x128xf32>
    %c17 = arith.constant 17 : index
    %107 = memref.load %arg1[%c17] : memref<156xf32, #tpu.memory_space<smem>>
    %108 = vector.broadcast %107 : f32 to vector<8x128xf32>
    %109 = arith.mulf %7, %108 : vector<8x128xf32>
    %110 = arith.addf %98, %109 : vector<8x128xf32>
    %c27 = arith.constant 27 : index
    %111 = memref.load %arg1[%c27] : memref<156xf32, #tpu.memory_space<smem>>
    %112 = vector.broadcast %111 : f32 to vector<8x128xf32>
    %113 = arith.mulf %11, %112 : vector<8x128xf32>
    %114 = arith.addf %102, %113 : vector<8x128xf32>
    %c9 = arith.constant 9 : index
    %115 = memref.load %arg1[%c9] : memref<156xf32, #tpu.memory_space<smem>>
    %116 = vector.broadcast %115 : f32 to vector<8x128xf32>
    %117 = arith.addf %106, %116 : vector<8x128xf32>
    %c19 = arith.constant 19 : index
    %118 = memref.load %arg1[%c19] : memref<156xf32, #tpu.memory_space<smem>>
    %119 = vector.broadcast %118 : f32 to vector<8x128xf32>
    %120 = arith.addf %110, %119 : vector<8x128xf32>
    %c29 = arith.constant 29 : index
    %121 = memref.load %arg1[%c29] : memref<156xf32, #tpu.memory_space<smem>>
    %122 = vector.broadcast %121 : f32 to vector<8x128xf32>
    %123 = arith.addf %114, %122 : vector<8x128xf32>
    %124 = arith.mulf %117, %120 : vector<8x128xf32>
    %125 = arith.addf %124, %123 : vector<8x128xf32>
    %cst_12 = arith.constant 0.000000e+00 : f32
    %126 = vector.broadcast %cst_12 : f32 to vector<8x128xf32>
    %127 = arith.maximumf %125, %126 : vector<8x128xf32>
    %128 = arith.mulf %69, %69 : vector<8x128xf32>
    %129 = arith.mulf %127, %127 : vector<8x128xf32>
    %c30 = arith.constant 30 : index
    %130 = memref.load %arg1[%c30] : memref<156xf32, #tpu.memory_space<smem>>
    %131 = vector.broadcast %130 : f32 to vector<8x128xf32>
    %132 = arith.mulf %69, %131 : vector<8x128xf32>
    %c42 = arith.constant 42 : index
    %133 = memref.load %arg1[%c42] : memref<156xf32, #tpu.memory_space<smem>>
    %134 = vector.broadcast %133 : f32 to vector<8x128xf32>
    %135 = arith.mulf %69, %134 : vector<8x128xf32>
    %c54 = arith.constant 54 : index
    %136 = memref.load %arg1[%c54] : memref<156xf32, #tpu.memory_space<smem>>
    %137 = vector.broadcast %136 : f32 to vector<8x128xf32>
    %138 = arith.mulf %128, %137 : vector<8x128xf32>
    %c34 = arith.constant 34 : index
    %139 = memref.load %arg1[%c34] : memref<156xf32, #tpu.memory_space<smem>>
    %140 = vector.broadcast %139 : f32 to vector<8x128xf32>
    %141 = arith.mulf %127, %140 : vector<8x128xf32>
    %142 = arith.addf %132, %141 : vector<8x128xf32>
    %c46 = arith.constant 46 : index
    %143 = memref.load %arg1[%c46] : memref<156xf32, #tpu.memory_space<smem>>
    %144 = vector.broadcast %143 : f32 to vector<8x128xf32>
    %145 = arith.mulf %127, %144 : vector<8x128xf32>
    %146 = arith.addf %135, %145 : vector<8x128xf32>
    %c58 = arith.constant 58 : index
    %147 = memref.load %arg1[%c58] : memref<156xf32, #tpu.memory_space<smem>>
    %148 = vector.broadcast %147 : f32 to vector<8x128xf32>
    %149 = arith.mulf %129, %148 : vector<8x128xf32>
    %150 = arith.addf %138, %149 : vector<8x128xf32>
    %c38 = arith.constant 38 : index
    %151 = memref.load %arg1[%c38] : memref<156xf32, #tpu.memory_space<smem>>
    %152 = vector.broadcast %151 : f32 to vector<8x128xf32>
    %153 = arith.addf %142, %152 : vector<8x128xf32>
    %c50 = arith.constant 50 : index
    %154 = memref.load %arg1[%c50] : memref<156xf32, #tpu.memory_space<smem>>
    %155 = vector.broadcast %154 : f32 to vector<8x128xf32>
    %156 = arith.addf %146, %155 : vector<8x128xf32>
    %c62 = arith.constant 62 : index
    %157 = memref.load %arg1[%c62] : memref<156xf32, #tpu.memory_space<smem>>
    %158 = vector.broadcast %157 : f32 to vector<8x128xf32>
    %159 = arith.addf %150, %158 : vector<8x128xf32>
    %160 = arith.mulf %153, %156 : vector<8x128xf32>
    %161 = arith.addf %160, %159 : vector<8x128xf32>
    %cst_13 = arith.constant 0.000000e+00 : f32
    %162 = vector.broadcast %cst_13 : f32 to vector<8x128xf32>
    %163 = arith.maximumf %161, %162 : vector<8x128xf32>
    %c31 = arith.constant 31 : index
    %164 = memref.load %arg1[%c31] : memref<156xf32, #tpu.memory_space<smem>>
    %165 = vector.broadcast %164 : f32 to vector<8x128xf32>
    %166 = arith.mulf %69, %165 : vector<8x128xf32>
    %c43 = arith.constant 43 : index
    %167 = memref.load %arg1[%c43] : memref<156xf32, #tpu.memory_space<smem>>
    %168 = vector.broadcast %167 : f32 to vector<8x128xf32>
    %169 = arith.mulf %69, %168 : vector<8x128xf32>
    %c55 = arith.constant 55 : index
    %170 = memref.load %arg1[%c55] : memref<156xf32, #tpu.memory_space<smem>>
    %171 = vector.broadcast %170 : f32 to vector<8x128xf32>
    %172 = arith.mulf %128, %171 : vector<8x128xf32>
    %c35 = arith.constant 35 : index
    %173 = memref.load %arg1[%c35] : memref<156xf32, #tpu.memory_space<smem>>
    %174 = vector.broadcast %173 : f32 to vector<8x128xf32>
    %175 = arith.mulf %127, %174 : vector<8x128xf32>
    %176 = arith.addf %166, %175 : vector<8x128xf32>
    %c47 = arith.constant 47 : index
    %177 = memref.load %arg1[%c47] : memref<156xf32, #tpu.memory_space<smem>>
    %178 = vector.broadcast %177 : f32 to vector<8x128xf32>
    %179 = arith.mulf %127, %178 : vector<8x128xf32>
    %180 = arith.addf %169, %179 : vector<8x128xf32>
    %c59 = arith.constant 59 : index
    %181 = memref.load %arg1[%c59] : memref<156xf32, #tpu.memory_space<smem>>
    %182 = vector.broadcast %181 : f32 to vector<8x128xf32>
    %183 = arith.mulf %129, %182 : vector<8x128xf32>
    %184 = arith.addf %172, %183 : vector<8x128xf32>
    %c39 = arith.constant 39 : index
    %185 = memref.load %arg1[%c39] : memref<156xf32, #tpu.memory_space<smem>>
    %186 = vector.broadcast %185 : f32 to vector<8x128xf32>
    %187 = arith.addf %176, %186 : vector<8x128xf32>
    %c51 = arith.constant 51 : index
    %188 = memref.load %arg1[%c51] : memref<156xf32, #tpu.memory_space<smem>>
    %189 = vector.broadcast %188 : f32 to vector<8x128xf32>
    %190 = arith.addf %180, %189 : vector<8x128xf32>
    %c63 = arith.constant 63 : index
    %191 = memref.load %arg1[%c63] : memref<156xf32, #tpu.memory_space<smem>>
    %192 = vector.broadcast %191 : f32 to vector<8x128xf32>
    %193 = arith.addf %184, %192 : vector<8x128xf32>
    %194 = arith.mulf %187, %190 : vector<8x128xf32>
    %195 = arith.addf %194, %193 : vector<8x128xf32>
    %cst_14 = arith.constant 0.000000e+00 : f32
    %196 = vector.broadcast %cst_14 : f32 to vector<8x128xf32>
    %197 = arith.maximumf %195, %196 : vector<8x128xf32>
    %c32 = arith.constant 32 : index
    %198 = memref.load %arg1[%c32] : memref<156xf32, #tpu.memory_space<smem>>
    %199 = vector.broadcast %198 : f32 to vector<8x128xf32>
    %200 = arith.mulf %69, %199 : vector<8x128xf32>
    %c44 = arith.constant 44 : index
    %201 = memref.load %arg1[%c44] : memref<156xf32, #tpu.memory_space<smem>>
    %202 = vector.broadcast %201 : f32 to vector<8x128xf32>
    %203 = arith.mulf %69, %202 : vector<8x128xf32>
    %c56 = arith.constant 56 : index
    %204 = memref.load %arg1[%c56] : memref<156xf32, #tpu.memory_space<smem>>
    %205 = vector.broadcast %204 : f32 to vector<8x128xf32>
    %206 = arith.mulf %128, %205 : vector<8x128xf32>
    %c36 = arith.constant 36 : index
    %207 = memref.load %arg1[%c36] : memref<156xf32, #tpu.memory_space<smem>>
    %208 = vector.broadcast %207 : f32 to vector<8x128xf32>
    %209 = arith.mulf %127, %208 : vector<8x128xf32>
    %210 = arith.addf %200, %209 : vector<8x128xf32>
    %c48 = arith.constant 48 : index
    %211 = memref.load %arg1[%c48] : memref<156xf32, #tpu.memory_space<smem>>
    %212 = vector.broadcast %211 : f32 to vector<8x128xf32>
    %213 = arith.mulf %127, %212 : vector<8x128xf32>
    %214 = arith.addf %203, %213 : vector<8x128xf32>
    %c60 = arith.constant 60 : index
    %215 = memref.load %arg1[%c60] : memref<156xf32, #tpu.memory_space<smem>>
    %216 = vector.broadcast %215 : f32 to vector<8x128xf32>
    %217 = arith.mulf %129, %216 : vector<8x128xf32>
    %218 = arith.addf %206, %217 : vector<8x128xf32>
    %c40 = arith.constant 40 : index
    %219 = memref.load %arg1[%c40] : memref<156xf32, #tpu.memory_space<smem>>
    %220 = vector.broadcast %219 : f32 to vector<8x128xf32>
    %221 = arith.addf %210, %220 : vector<8x128xf32>
    %c52 = arith.constant 52 : index
    %222 = memref.load %arg1[%c52] : memref<156xf32, #tpu.memory_space<smem>>
    %223 = vector.broadcast %222 : f32 to vector<8x128xf32>
    %224 = arith.addf %214, %223 : vector<8x128xf32>
    %c64 = arith.constant 64 : index
    %225 = memref.load %arg1[%c64] : memref<156xf32, #tpu.memory_space<smem>>
    %226 = vector.broadcast %225 : f32 to vector<8x128xf32>
    %227 = arith.addf %218, %226 : vector<8x128xf32>
    %228 = arith.mulf %221, %224 : vector<8x128xf32>
    %229 = arith.addf %228, %227 : vector<8x128xf32>
    %cst_15 = arith.constant 0.000000e+00 : f32
    %230 = vector.broadcast %cst_15 : f32 to vector<8x128xf32>
    %231 = arith.maximumf %229, %230 : vector<8x128xf32>
    %c33 = arith.constant 33 : index
    %232 = memref.load %arg1[%c33] : memref<156xf32, #tpu.memory_space<smem>>
    %233 = vector.broadcast %232 : f32 to vector<8x128xf32>
    %234 = arith.mulf %69, %233 : vector<8x128xf32>
    %c45 = arith.constant 45 : index
    %235 = memref.load %arg1[%c45] : memref<156xf32, #tpu.memory_space<smem>>
    %236 = vector.broadcast %235 : f32 to vector<8x128xf32>
    %237 = arith.mulf %69, %236 : vector<8x128xf32>
    %c57 = arith.constant 57 : index
    %238 = memref.load %arg1[%c57] : memref<156xf32, #tpu.memory_space<smem>>
    %239 = vector.broadcast %238 : f32 to vector<8x128xf32>
    %240 = arith.mulf %128, %239 : vector<8x128xf32>
    %c37 = arith.constant 37 : index
    %241 = memref.load %arg1[%c37] : memref<156xf32, #tpu.memory_space<smem>>
    %242 = vector.broadcast %241 : f32 to vector<8x128xf32>
    %243 = arith.mulf %127, %242 : vector<8x128xf32>
    %244 = arith.addf %234, %243 : vector<8x128xf32>
    %c49 = arith.constant 49 : index
    %245 = memref.load %arg1[%c49] : memref<156xf32, #tpu.memory_space<smem>>
    %246 = vector.broadcast %245 : f32 to vector<8x128xf32>
    %247 = arith.mulf %127, %246 : vector<8x128xf32>
    %248 = arith.addf %237, %247 : vector<8x128xf32>
    %c61 = arith.constant 61 : index
    %249 = memref.load %arg1[%c61] : memref<156xf32, #tpu.memory_space<smem>>
    %250 = vector.broadcast %249 : f32 to vector<8x128xf32>
    %251 = arith.mulf %129, %250 : vector<8x128xf32>
    %252 = arith.addf %240, %251 : vector<8x128xf32>
    %c41 = arith.constant 41 : index
    %253 = memref.load %arg1[%c41] : memref<156xf32, #tpu.memory_space<smem>>
    %254 = vector.broadcast %253 : f32 to vector<8x128xf32>
    %255 = arith.addf %244, %254 : vector<8x128xf32>
    %c53 = arith.constant 53 : index
    %256 = memref.load %arg1[%c53] : memref<156xf32, #tpu.memory_space<smem>>
    %257 = vector.broadcast %256 : f32 to vector<8x128xf32>
    %258 = arith.addf %248, %257 : vector<8x128xf32>
    %c65 = arith.constant 65 : index
    %259 = memref.load %arg1[%c65] : memref<156xf32, #tpu.memory_space<smem>>
    %260 = vector.broadcast %259 : f32 to vector<8x128xf32>
    %261 = arith.addf %252, %260 : vector<8x128xf32>
    %262 = arith.mulf %255, %258 : vector<8x128xf32>
    %263 = arith.addf %262, %261 : vector<8x128xf32>
    %cst_16 = arith.constant 0.000000e+00 : f32
    %264 = vector.broadcast %cst_16 : f32 to vector<8x128xf32>
    %265 = arith.maximumf %263, %264 : vector<8x128xf32>
    %266 = arith.mulf %163, %163 : vector<8x128xf32>
    %267 = arith.mulf %197, %197 : vector<8x128xf32>
    %268 = arith.mulf %231, %231 : vector<8x128xf32>
    %269 = arith.mulf %265, %265 : vector<8x128xf32>
    %c66 = arith.constant 66 : index
    %270 = memref.load %arg1[%c66] : memref<156xf32, #tpu.memory_space<smem>>
    %271 = vector.broadcast %270 : f32 to vector<8x128xf32>
    %272 = arith.mulf %163, %271 : vector<8x128xf32>
    %c86 = arith.constant 86 : index
    %273 = memref.load %arg1[%c86] : memref<156xf32, #tpu.memory_space<smem>>
    %274 = vector.broadcast %273 : f32 to vector<8x128xf32>
    %275 = arith.mulf %163, %274 : vector<8x128xf32>
    %c106 = arith.constant 106 : index
    %276 = memref.load %arg1[%c106] : memref<156xf32, #tpu.memory_space<smem>>
    %277 = vector.broadcast %276 : f32 to vector<8x128xf32>
    %278 = arith.mulf %266, %277 : vector<8x128xf32>
    %c70 = arith.constant 70 : index
    %279 = memref.load %arg1[%c70] : memref<156xf32, #tpu.memory_space<smem>>
    %280 = vector.broadcast %279 : f32 to vector<8x128xf32>
    %281 = arith.mulf %197, %280 : vector<8x128xf32>
    %282 = arith.addf %272, %281 : vector<8x128xf32>
    %c90 = arith.constant 90 : index
    %283 = memref.load %arg1[%c90] : memref<156xf32, #tpu.memory_space<smem>>
    %284 = vector.broadcast %283 : f32 to vector<8x128xf32>
    %285 = arith.mulf %197, %284 : vector<8x128xf32>
    %286 = arith.addf %275, %285 : vector<8x128xf32>
    %c110 = arith.constant 110 : index
    %287 = memref.load %arg1[%c110] : memref<156xf32, #tpu.memory_space<smem>>
    %288 = vector.broadcast %287 : f32 to vector<8x128xf32>
    %289 = arith.mulf %267, %288 : vector<8x128xf32>
    %290 = arith.addf %278, %289 : vector<8x128xf32>
    %c74 = arith.constant 74 : index
    %291 = memref.load %arg1[%c74] : memref<156xf32, #tpu.memory_space<smem>>
    %292 = vector.broadcast %291 : f32 to vector<8x128xf32>
    %293 = arith.mulf %231, %292 : vector<8x128xf32>
    %294 = arith.addf %282, %293 : vector<8x128xf32>
    %c94 = arith.constant 94 : index
    %295 = memref.load %arg1[%c94] : memref<156xf32, #tpu.memory_space<smem>>
    %296 = vector.broadcast %295 : f32 to vector<8x128xf32>
    %297 = arith.mulf %231, %296 : vector<8x128xf32>
    %298 = arith.addf %286, %297 : vector<8x128xf32>
    %c114 = arith.constant 114 : index
    %299 = memref.load %arg1[%c114] : memref<156xf32, #tpu.memory_space<smem>>
    %300 = vector.broadcast %299 : f32 to vector<8x128xf32>
    %301 = arith.mulf %268, %300 : vector<8x128xf32>
    %302 = arith.addf %290, %301 : vector<8x128xf32>
    %c78 = arith.constant 78 : index
    %303 = memref.load %arg1[%c78] : memref<156xf32, #tpu.memory_space<smem>>
    %304 = vector.broadcast %303 : f32 to vector<8x128xf32>
    %305 = arith.mulf %265, %304 : vector<8x128xf32>
    %306 = arith.addf %294, %305 : vector<8x128xf32>
    %c98 = arith.constant 98 : index
    %307 = memref.load %arg1[%c98] : memref<156xf32, #tpu.memory_space<smem>>
    %308 = vector.broadcast %307 : f32 to vector<8x128xf32>
    %309 = arith.mulf %265, %308 : vector<8x128xf32>
    %310 = arith.addf %298, %309 : vector<8x128xf32>
    %c118 = arith.constant 118 : index
    %311 = memref.load %arg1[%c118] : memref<156xf32, #tpu.memory_space<smem>>
    %312 = vector.broadcast %311 : f32 to vector<8x128xf32>
    %313 = arith.mulf %269, %312 : vector<8x128xf32>
    %314 = arith.addf %302, %313 : vector<8x128xf32>
    %c82 = arith.constant 82 : index
    %315 = memref.load %arg1[%c82] : memref<156xf32, #tpu.memory_space<smem>>
    %316 = vector.broadcast %315 : f32 to vector<8x128xf32>
    %317 = arith.addf %306, %316 : vector<8x128xf32>
    %c102 = arith.constant 102 : index
    %318 = memref.load %arg1[%c102] : memref<156xf32, #tpu.memory_space<smem>>
    %319 = vector.broadcast %318 : f32 to vector<8x128xf32>
    %320 = arith.addf %310, %319 : vector<8x128xf32>
    %c122 = arith.constant 122 : index
    %321 = memref.load %arg1[%c122] : memref<156xf32, #tpu.memory_space<smem>>
    %322 = vector.broadcast %321 : f32 to vector<8x128xf32>
    %323 = arith.addf %314, %322 : vector<8x128xf32>
    %324 = arith.mulf %317, %320 : vector<8x128xf32>
    %325 = arith.addf %324, %323 : vector<8x128xf32>
    %cst_17 = arith.constant 0.000000e+00 : f32
    %326 = vector.broadcast %cst_17 : f32 to vector<8x128xf32>
    %327 = arith.maximumf %325, %326 : vector<8x128xf32>
    %c67 = arith.constant 67 : index
    %328 = memref.load %arg1[%c67] : memref<156xf32, #tpu.memory_space<smem>>
    %329 = vector.broadcast %328 : f32 to vector<8x128xf32>
    %330 = arith.mulf %163, %329 : vector<8x128xf32>
    %c87 = arith.constant 87 : index
    %331 = memref.load %arg1[%c87] : memref<156xf32, #tpu.memory_space<smem>>
    %332 = vector.broadcast %331 : f32 to vector<8x128xf32>
    %333 = arith.mulf %163, %332 : vector<8x128xf32>
    %c107 = arith.constant 107 : index
    %334 = memref.load %arg1[%c107] : memref<156xf32, #tpu.memory_space<smem>>
    %335 = vector.broadcast %334 : f32 to vector<8x128xf32>
    %336 = arith.mulf %266, %335 : vector<8x128xf32>
    %c71 = arith.constant 71 : index
    %337 = memref.load %arg1[%c71] : memref<156xf32, #tpu.memory_space<smem>>
    %338 = vector.broadcast %337 : f32 to vector<8x128xf32>
    %339 = arith.mulf %197, %338 : vector<8x128xf32>
    %340 = arith.addf %330, %339 : vector<8x128xf32>
    %c91 = arith.constant 91 : index
    %341 = memref.load %arg1[%c91] : memref<156xf32, #tpu.memory_space<smem>>
    %342 = vector.broadcast %341 : f32 to vector<8x128xf32>
    %343 = arith.mulf %197, %342 : vector<8x128xf32>
    %344 = arith.addf %333, %343 : vector<8x128xf32>
    %c111 = arith.constant 111 : index
    %345 = memref.load %arg1[%c111] : memref<156xf32, #tpu.memory_space<smem>>
    %346 = vector.broadcast %345 : f32 to vector<8x128xf32>
    %347 = arith.mulf %267, %346 : vector<8x128xf32>
    %348 = arith.addf %336, %347 : vector<8x128xf32>
    %c75 = arith.constant 75 : index
    %349 = memref.load %arg1[%c75] : memref<156xf32, #tpu.memory_space<smem>>
    %350 = vector.broadcast %349 : f32 to vector<8x128xf32>
    %351 = arith.mulf %231, %350 : vector<8x128xf32>
    %352 = arith.addf %340, %351 : vector<8x128xf32>
    %c95 = arith.constant 95 : index
    %353 = memref.load %arg1[%c95] : memref<156xf32, #tpu.memory_space<smem>>
    %354 = vector.broadcast %353 : f32 to vector<8x128xf32>
    %355 = arith.mulf %231, %354 : vector<8x128xf32>
    %356 = arith.addf %344, %355 : vector<8x128xf32>
    %c115 = arith.constant 115 : index
    %357 = memref.load %arg1[%c115] : memref<156xf32, #tpu.memory_space<smem>>
    %358 = vector.broadcast %357 : f32 to vector<8x128xf32>
    %359 = arith.mulf %268, %358 : vector<8x128xf32>
    %360 = arith.addf %348, %359 : vector<8x128xf32>
    %c79 = arith.constant 79 : index
    %361 = memref.load %arg1[%c79] : memref<156xf32, #tpu.memory_space<smem>>
    %362 = vector.broadcast %361 : f32 to vector<8x128xf32>
    %363 = arith.mulf %265, %362 : vector<8x128xf32>
    %364 = arith.addf %352, %363 : vector<8x128xf32>
    %c99 = arith.constant 99 : index
    %365 = memref.load %arg1[%c99] : memref<156xf32, #tpu.memory_space<smem>>
    %366 = vector.broadcast %365 : f32 to vector<8x128xf32>
    %367 = arith.mulf %265, %366 : vector<8x128xf32>
    %368 = arith.addf %356, %367 : vector<8x128xf32>
    %c119 = arith.constant 119 : index
    %369 = memref.load %arg1[%c119] : memref<156xf32, #tpu.memory_space<smem>>
    %370 = vector.broadcast %369 : f32 to vector<8x128xf32>
    %371 = arith.mulf %269, %370 : vector<8x128xf32>
    %372 = arith.addf %360, %371 : vector<8x128xf32>
    %c83 = arith.constant 83 : index
    %373 = memref.load %arg1[%c83] : memref<156xf32, #tpu.memory_space<smem>>
    %374 = vector.broadcast %373 : f32 to vector<8x128xf32>
    %375 = arith.addf %364, %374 : vector<8x128xf32>
    %c103 = arith.constant 103 : index
    %376 = memref.load %arg1[%c103] : memref<156xf32, #tpu.memory_space<smem>>
    %377 = vector.broadcast %376 : f32 to vector<8x128xf32>
    %378 = arith.addf %368, %377 : vector<8x128xf32>
    %c123 = arith.constant 123 : index
    %379 = memref.load %arg1[%c123] : memref<156xf32, #tpu.memory_space<smem>>
    %380 = vector.broadcast %379 : f32 to vector<8x128xf32>
    %381 = arith.addf %372, %380 : vector<8x128xf32>
    %382 = arith.mulf %375, %378 : vector<8x128xf32>
    %383 = arith.addf %382, %381 : vector<8x128xf32>
    %cst_18 = arith.constant 0.000000e+00 : f32
    %384 = vector.broadcast %cst_18 : f32 to vector<8x128xf32>
    %385 = arith.maximumf %383, %384 : vector<8x128xf32>
    %c68 = arith.constant 68 : index
    %386 = memref.load %arg1[%c68] : memref<156xf32, #tpu.memory_space<smem>>
    %387 = vector.broadcast %386 : f32 to vector<8x128xf32>
    %388 = arith.mulf %163, %387 : vector<8x128xf32>
    %c88 = arith.constant 88 : index
    %389 = memref.load %arg1[%c88] : memref<156xf32, #tpu.memory_space<smem>>
    %390 = vector.broadcast %389 : f32 to vector<8x128xf32>
    %391 = arith.mulf %163, %390 : vector<8x128xf32>
    %c108 = arith.constant 108 : index
    %392 = memref.load %arg1[%c108] : memref<156xf32, #tpu.memory_space<smem>>
    %393 = vector.broadcast %392 : f32 to vector<8x128xf32>
    %394 = arith.mulf %266, %393 : vector<8x128xf32>
    %c72 = arith.constant 72 : index
    %395 = memref.load %arg1[%c72] : memref<156xf32, #tpu.memory_space<smem>>
    %396 = vector.broadcast %395 : f32 to vector<8x128xf32>
    %397 = arith.mulf %197, %396 : vector<8x128xf32>
    %398 = arith.addf %388, %397 : vector<8x128xf32>
    %c92 = arith.constant 92 : index
    %399 = memref.load %arg1[%c92] : memref<156xf32, #tpu.memory_space<smem>>
    %400 = vector.broadcast %399 : f32 to vector<8x128xf32>
    %401 = arith.mulf %197, %400 : vector<8x128xf32>
    %402 = arith.addf %391, %401 : vector<8x128xf32>
    %c112 = arith.constant 112 : index
    %403 = memref.load %arg1[%c112] : memref<156xf32, #tpu.memory_space<smem>>
    %404 = vector.broadcast %403 : f32 to vector<8x128xf32>
    %405 = arith.mulf %267, %404 : vector<8x128xf32>
    %406 = arith.addf %394, %405 : vector<8x128xf32>
    %c76 = arith.constant 76 : index
    %407 = memref.load %arg1[%c76] : memref<156xf32, #tpu.memory_space<smem>>
    %408 = vector.broadcast %407 : f32 to vector<8x128xf32>
    %409 = arith.mulf %231, %408 : vector<8x128xf32>
    %410 = arith.addf %398, %409 : vector<8x128xf32>
    %c96 = arith.constant 96 : index
    %411 = memref.load %arg1[%c96] : memref<156xf32, #tpu.memory_space<smem>>
    %412 = vector.broadcast %411 : f32 to vector<8x128xf32>
    %413 = arith.mulf %231, %412 : vector<8x128xf32>
    %414 = arith.addf %402, %413 : vector<8x128xf32>
    %c116 = arith.constant 116 : index
    %415 = memref.load %arg1[%c116] : memref<156xf32, #tpu.memory_space<smem>>
    %416 = vector.broadcast %415 : f32 to vector<8x128xf32>
    %417 = arith.mulf %268, %416 : vector<8x128xf32>
    %418 = arith.addf %406, %417 : vector<8x128xf32>
    %c80 = arith.constant 80 : index
    %419 = memref.load %arg1[%c80] : memref<156xf32, #tpu.memory_space<smem>>
    %420 = vector.broadcast %419 : f32 to vector<8x128xf32>
    %421 = arith.mulf %265, %420 : vector<8x128xf32>
    %422 = arith.addf %410, %421 : vector<8x128xf32>
    %c100 = arith.constant 100 : index
    %423 = memref.load %arg1[%c100] : memref<156xf32, #tpu.memory_space<smem>>
    %424 = vector.broadcast %423 : f32 to vector<8x128xf32>
    %425 = arith.mulf %265, %424 : vector<8x128xf32>
    %426 = arith.addf %414, %425 : vector<8x128xf32>
    %c120 = arith.constant 120 : index
    %427 = memref.load %arg1[%c120] : memref<156xf32, #tpu.memory_space<smem>>
    %428 = vector.broadcast %427 : f32 to vector<8x128xf32>
    %429 = arith.mulf %269, %428 : vector<8x128xf32>
    %430 = arith.addf %418, %429 : vector<8x128xf32>
    %c84 = arith.constant 84 : index
    %431 = memref.load %arg1[%c84] : memref<156xf32, #tpu.memory_space<smem>>
    %432 = vector.broadcast %431 : f32 to vector<8x128xf32>
    %433 = arith.addf %422, %432 : vector<8x128xf32>
    %c104 = arith.constant 104 : index
    %434 = memref.load %arg1[%c104] : memref<156xf32, #tpu.memory_space<smem>>
    %435 = vector.broadcast %434 : f32 to vector<8x128xf32>
    %436 = arith.addf %426, %435 : vector<8x128xf32>
    %c124 = arith.constant 124 : index
    %437 = memref.load %arg1[%c124] : memref<156xf32, #tpu.memory_space<smem>>
    %438 = vector.broadcast %437 : f32 to vector<8x128xf32>
    %439 = arith.addf %430, %438 : vector<8x128xf32>
    %440 = arith.mulf %433, %436 : vector<8x128xf32>
    %441 = arith.addf %440, %439 : vector<8x128xf32>
    %cst_19 = arith.constant 0.000000e+00 : f32
    %442 = vector.broadcast %cst_19 : f32 to vector<8x128xf32>
    %443 = arith.maximumf %441, %442 : vector<8x128xf32>
    %c69 = arith.constant 69 : index
    %444 = memref.load %arg1[%c69] : memref<156xf32, #tpu.memory_space<smem>>
    %445 = vector.broadcast %444 : f32 to vector<8x128xf32>
    %446 = arith.mulf %163, %445 : vector<8x128xf32>
    %c89 = arith.constant 89 : index
    %447 = memref.load %arg1[%c89] : memref<156xf32, #tpu.memory_space<smem>>
    %448 = vector.broadcast %447 : f32 to vector<8x128xf32>
    %449 = arith.mulf %163, %448 : vector<8x128xf32>
    %c109 = arith.constant 109 : index
    %450 = memref.load %arg1[%c109] : memref<156xf32, #tpu.memory_space<smem>>
    %451 = vector.broadcast %450 : f32 to vector<8x128xf32>
    %452 = arith.mulf %266, %451 : vector<8x128xf32>
    %c73 = arith.constant 73 : index
    %453 = memref.load %arg1[%c73] : memref<156xf32, #tpu.memory_space<smem>>
    %454 = vector.broadcast %453 : f32 to vector<8x128xf32>
    %455 = arith.mulf %197, %454 : vector<8x128xf32>
    %456 = arith.addf %446, %455 : vector<8x128xf32>
    %c93 = arith.constant 93 : index
    %457 = memref.load %arg1[%c93] : memref<156xf32, #tpu.memory_space<smem>>
    %458 = vector.broadcast %457 : f32 to vector<8x128xf32>
    %459 = arith.mulf %197, %458 : vector<8x128xf32>
    %460 = arith.addf %449, %459 : vector<8x128xf32>
    %c113 = arith.constant 113 : index
    %461 = memref.load %arg1[%c113] : memref<156xf32, #tpu.memory_space<smem>>
    %462 = vector.broadcast %461 : f32 to vector<8x128xf32>
    %463 = arith.mulf %267, %462 : vector<8x128xf32>
    %464 = arith.addf %452, %463 : vector<8x128xf32>
    %c77 = arith.constant 77 : index
    %465 = memref.load %arg1[%c77] : memref<156xf32, #tpu.memory_space<smem>>
    %466 = vector.broadcast %465 : f32 to vector<8x128xf32>
    %467 = arith.mulf %231, %466 : vector<8x128xf32>
    %468 = arith.addf %456, %467 : vector<8x128xf32>
    %c97 = arith.constant 97 : index
    %469 = memref.load %arg1[%c97] : memref<156xf32, #tpu.memory_space<smem>>
    %470 = vector.broadcast %469 : f32 to vector<8x128xf32>
    %471 = arith.mulf %231, %470 : vector<8x128xf32>
    %472 = arith.addf %460, %471 : vector<8x128xf32>
    %c117 = arith.constant 117 : index
    %473 = memref.load %arg1[%c117] : memref<156xf32, #tpu.memory_space<smem>>
    %474 = vector.broadcast %473 : f32 to vector<8x128xf32>
    %475 = arith.mulf %268, %474 : vector<8x128xf32>
    %476 = arith.addf %464, %475 : vector<8x128xf32>
    %c81 = arith.constant 81 : index
    %477 = memref.load %arg1[%c81] : memref<156xf32, #tpu.memory_space<smem>>
    %478 = vector.broadcast %477 : f32 to vector<8x128xf32>
    %479 = arith.mulf %265, %478 : vector<8x128xf32>
    %480 = arith.addf %468, %479 : vector<8x128xf32>
    %c101 = arith.constant 101 : index
    %481 = memref.load %arg1[%c101] : memref<156xf32, #tpu.memory_space<smem>>
    %482 = vector.broadcast %481 : f32 to vector<8x128xf32>
    %483 = arith.mulf %265, %482 : vector<8x128xf32>
    %484 = arith.addf %472, %483 : vector<8x128xf32>
    %c121 = arith.constant 121 : index
    %485 = memref.load %arg1[%c121] : memref<156xf32, #tpu.memory_space<smem>>
    %486 = vector.broadcast %485 : f32 to vector<8x128xf32>
    %487 = arith.mulf %269, %486 : vector<8x128xf32>
    %488 = arith.addf %476, %487 : vector<8x128xf32>
    %c85 = arith.constant 85 : index
    %489 = memref.load %arg1[%c85] : memref<156xf32, #tpu.memory_space<smem>>
    %490 = vector.broadcast %489 : f32 to vector<8x128xf32>
    %491 = arith.addf %480, %490 : vector<8x128xf32>
    %c105 = arith.constant 105 : index
    %492 = memref.load %arg1[%c105] : memref<156xf32, #tpu.memory_space<smem>>
    %493 = vector.broadcast %492 : f32 to vector<8x128xf32>
    %494 = arith.addf %484, %493 : vector<8x128xf32>
    %c125 = arith.constant 125 : index
    %495 = memref.load %arg1[%c125] : memref<156xf32, #tpu.memory_space<smem>>
    %496 = vector.broadcast %495 : f32 to vector<8x128xf32>
    %497 = arith.addf %488, %496 : vector<8x128xf32>
    %498 = arith.mulf %491, %494 : vector<8x128xf32>
    %499 = arith.addf %498, %497 : vector<8x128xf32>
    %cst_20 = arith.constant 0.000000e+00 : f32
    %500 = vector.broadcast %cst_20 : f32 to vector<8x128xf32>
    %501 = arith.maximumf %499, %500 : vector<8x128xf32>
    %502 = arith.mulf %327, %327 : vector<8x128xf32>
    %503 = arith.mulf %385, %385 : vector<8x128xf32>
    %504 = arith.mulf %443, %443 : vector<8x128xf32>
    %505 = arith.mulf %501, %501 : vector<8x128xf32>
    %c126 = arith.constant 126 : index
    %506 = memref.load %arg1[%c126] : memref<156xf32, #tpu.memory_space<smem>>
    %507 = vector.broadcast %506 : f32 to vector<8x128xf32>
    %508 = arith.mulf %327, %507 : vector<8x128xf32>
    %c136 = arith.constant 136 : index
    %509 = memref.load %arg1[%c136] : memref<156xf32, #tpu.memory_space<smem>>
    %510 = vector.broadcast %509 : f32 to vector<8x128xf32>
    %511 = arith.mulf %327, %510 : vector<8x128xf32>
    %c146 = arith.constant 146 : index
    %512 = memref.load %arg1[%c146] : memref<156xf32, #tpu.memory_space<smem>>
    %513 = vector.broadcast %512 : f32 to vector<8x128xf32>
    %514 = arith.mulf %502, %513 : vector<8x128xf32>
    %c128 = arith.constant 128 : index
    %515 = memref.load %arg1[%c128] : memref<156xf32, #tpu.memory_space<smem>>
    %516 = vector.broadcast %515 : f32 to vector<8x128xf32>
    %517 = arith.mulf %385, %516 : vector<8x128xf32>
    %518 = arith.addf %508, %517 : vector<8x128xf32>
    %c138 = arith.constant 138 : index
    %519 = memref.load %arg1[%c138] : memref<156xf32, #tpu.memory_space<smem>>
    %520 = vector.broadcast %519 : f32 to vector<8x128xf32>
    %521 = arith.mulf %385, %520 : vector<8x128xf32>
    %522 = arith.addf %511, %521 : vector<8x128xf32>
    %c148 = arith.constant 148 : index
    %523 = memref.load %arg1[%c148] : memref<156xf32, #tpu.memory_space<smem>>
    %524 = vector.broadcast %523 : f32 to vector<8x128xf32>
    %525 = arith.mulf %503, %524 : vector<8x128xf32>
    %526 = arith.addf %514, %525 : vector<8x128xf32>
    %c130 = arith.constant 130 : index
    %527 = memref.load %arg1[%c130] : memref<156xf32, #tpu.memory_space<smem>>
    %528 = vector.broadcast %527 : f32 to vector<8x128xf32>
    %529 = arith.mulf %443, %528 : vector<8x128xf32>
    %530 = arith.addf %518, %529 : vector<8x128xf32>
    %c140 = arith.constant 140 : index
    %531 = memref.load %arg1[%c140] : memref<156xf32, #tpu.memory_space<smem>>
    %532 = vector.broadcast %531 : f32 to vector<8x128xf32>
    %533 = arith.mulf %443, %532 : vector<8x128xf32>
    %534 = arith.addf %522, %533 : vector<8x128xf32>
    %c150 = arith.constant 150 : index
    %535 = memref.load %arg1[%c150] : memref<156xf32, #tpu.memory_space<smem>>
    %536 = vector.broadcast %535 : f32 to vector<8x128xf32>
    %537 = arith.mulf %504, %536 : vector<8x128xf32>
    %538 = arith.addf %526, %537 : vector<8x128xf32>
    %c132 = arith.constant 132 : index
    %539 = memref.load %arg1[%c132] : memref<156xf32, #tpu.memory_space<smem>>
    %540 = vector.broadcast %539 : f32 to vector<8x128xf32>
    %541 = arith.mulf %501, %540 : vector<8x128xf32>
    %542 = arith.addf %530, %541 : vector<8x128xf32>
    %c142 = arith.constant 142 : index
    %543 = memref.load %arg1[%c142] : memref<156xf32, #tpu.memory_space<smem>>
    %544 = vector.broadcast %543 : f32 to vector<8x128xf32>
    %545 = arith.mulf %501, %544 : vector<8x128xf32>
    %546 = arith.addf %534, %545 : vector<8x128xf32>
    %c152 = arith.constant 152 : index
    %547 = memref.load %arg1[%c152] : memref<156xf32, #tpu.memory_space<smem>>
    %548 = vector.broadcast %547 : f32 to vector<8x128xf32>
    %549 = arith.mulf %505, %548 : vector<8x128xf32>
    %550 = arith.addf %538, %549 : vector<8x128xf32>
    %c134 = arith.constant 134 : index
    %551 = memref.load %arg1[%c134] : memref<156xf32, #tpu.memory_space<smem>>
    %552 = vector.broadcast %551 : f32 to vector<8x128xf32>
    %553 = arith.addf %542, %552 : vector<8x128xf32>
    %c144 = arith.constant 144 : index
    %554 = memref.load %arg1[%c144] : memref<156xf32, #tpu.memory_space<smem>>
    %555 = vector.broadcast %554 : f32 to vector<8x128xf32>
    %556 = arith.addf %546, %555 : vector<8x128xf32>
    %c154 = arith.constant 154 : index
    %557 = memref.load %arg1[%c154] : memref<156xf32, #tpu.memory_space<smem>>
    %558 = vector.broadcast %557 : f32 to vector<8x128xf32>
    %559 = arith.addf %550, %558 : vector<8x128xf32>
    %560 = arith.mulf %553, %556 : vector<8x128xf32>
    %561 = arith.addf %560, %559 : vector<8x128xf32>
    %c127 = arith.constant 127 : index
    %562 = memref.load %arg1[%c127] : memref<156xf32, #tpu.memory_space<smem>>
    %563 = vector.broadcast %562 : f32 to vector<8x128xf32>
    %564 = arith.mulf %327, %563 : vector<8x128xf32>
    %c137 = arith.constant 137 : index
    %565 = memref.load %arg1[%c137] : memref<156xf32, #tpu.memory_space<smem>>
    %566 = vector.broadcast %565 : f32 to vector<8x128xf32>
    %567 = arith.mulf %327, %566 : vector<8x128xf32>
    %c147 = arith.constant 147 : index
    %568 = memref.load %arg1[%c147] : memref<156xf32, #tpu.memory_space<smem>>
    %569 = vector.broadcast %568 : f32 to vector<8x128xf32>
    %570 = arith.mulf %502, %569 : vector<8x128xf32>
    %c129 = arith.constant 129 : index
    %571 = memref.load %arg1[%c129] : memref<156xf32, #tpu.memory_space<smem>>
    %572 = vector.broadcast %571 : f32 to vector<8x128xf32>
    %573 = arith.mulf %385, %572 : vector<8x128xf32>
    %574 = arith.addf %564, %573 : vector<8x128xf32>
    %c139 = arith.constant 139 : index
    %575 = memref.load %arg1[%c139] : memref<156xf32, #tpu.memory_space<smem>>
    %576 = vector.broadcast %575 : f32 to vector<8x128xf32>
    %577 = arith.mulf %385, %576 : vector<8x128xf32>
    %578 = arith.addf %567, %577 : vector<8x128xf32>
    %c149 = arith.constant 149 : index
    %579 = memref.load %arg1[%c149] : memref<156xf32, #tpu.memory_space<smem>>
    %580 = vector.broadcast %579 : f32 to vector<8x128xf32>
    %581 = arith.mulf %503, %580 : vector<8x128xf32>
    %582 = arith.addf %570, %581 : vector<8x128xf32>
    %c131 = arith.constant 131 : index
    %583 = memref.load %arg1[%c131] : memref<156xf32, #tpu.memory_space<smem>>
    %584 = vector.broadcast %583 : f32 to vector<8x128xf32>
    %585 = arith.mulf %443, %584 : vector<8x128xf32>
    %586 = arith.addf %574, %585 : vector<8x128xf32>
    %c141 = arith.constant 141 : index
    %587 = memref.load %arg1[%c141] : memref<156xf32, #tpu.memory_space<smem>>
    %588 = vector.broadcast %587 : f32 to vector<8x128xf32>
    %589 = arith.mulf %443, %588 : vector<8x128xf32>
    %590 = arith.addf %578, %589 : vector<8x128xf32>
    %c151 = arith.constant 151 : index
    %591 = memref.load %arg1[%c151] : memref<156xf32, #tpu.memory_space<smem>>
    %592 = vector.broadcast %591 : f32 to vector<8x128xf32>
    %593 = arith.mulf %504, %592 : vector<8x128xf32>
    %594 = arith.addf %582, %593 : vector<8x128xf32>
    %c133 = arith.constant 133 : index
    %595 = memref.load %arg1[%c133] : memref<156xf32, #tpu.memory_space<smem>>
    %596 = vector.broadcast %595 : f32 to vector<8x128xf32>
    %597 = arith.mulf %501, %596 : vector<8x128xf32>
    %598 = arith.addf %586, %597 : vector<8x128xf32>
    %c143 = arith.constant 143 : index
    %599 = memref.load %arg1[%c143] : memref<156xf32, #tpu.memory_space<smem>>
    %600 = vector.broadcast %599 : f32 to vector<8x128xf32>
    %601 = arith.mulf %501, %600 : vector<8x128xf32>
    %602 = arith.addf %590, %601 : vector<8x128xf32>
    %c153 = arith.constant 153 : index
    %603 = memref.load %arg1[%c153] : memref<156xf32, #tpu.memory_space<smem>>
    %604 = vector.broadcast %603 : f32 to vector<8x128xf32>
    %605 = arith.mulf %505, %604 : vector<8x128xf32>
    %606 = arith.addf %594, %605 : vector<8x128xf32>
    %c135 = arith.constant 135 : index
    %607 = memref.load %arg1[%c135] : memref<156xf32, #tpu.memory_space<smem>>
    %608 = vector.broadcast %607 : f32 to vector<8x128xf32>
    %609 = arith.addf %598, %608 : vector<8x128xf32>
    %c145 = arith.constant 145 : index
    %610 = memref.load %arg1[%c145] : memref<156xf32, #tpu.memory_space<smem>>
    %611 = vector.broadcast %610 : f32 to vector<8x128xf32>
    %612 = arith.addf %602, %611 : vector<8x128xf32>
    %c155 = arith.constant 155 : index
    %613 = memref.load %arg1[%c155] : memref<156xf32, #tpu.memory_space<smem>>
    %614 = vector.broadcast %613 : f32 to vector<8x128xf32>
    %615 = arith.addf %606, %614 : vector<8x128xf32>
    %616 = arith.mulf %609, %612 : vector<8x128xf32>
    %617 = arith.addf %616, %615 : vector<8x128xf32>
    %618 = arith.subf %617, %561 : vector<8x128xf32>
    %cst_21 = arith.constant 8.000000e+01 : f32
    %619 = vector.broadcast %cst_21 : f32 to vector<8x128xf32>
    %620 = arith.minimumf %618, %619 : vector<8x128xf32>
    %621 = math.exp %620 : vector<8x128xf32>
    %cst_22 = arith.constant 1.000000e+00 : f32
    %622 = vector.broadcast %cst_22 : f32 to vector<8x128xf32>
    %623 = arith.addf %622, %621 : vector<8x128xf32>
    %624 = tpu.reciprocal %623 {approx = true} : vector<8x128xf32> -> vector<8x128xf32>
    %625 = arith.mulf %623, %624 : vector<8x128xf32>
    %cst_23 = arith.constant 2.000000e+00 : f32
    %626 = vector.broadcast %cst_23 : f32 to vector<8x128xf32>
    %627 = arith.subf %626, %625 : vector<8x128xf32>
    %628 = arith.mulf %624, %627 : vector<8x128xf32>
    %cst_24 = arith.constant 1.000000e+00 : f32
    %629 = vector.broadcast %cst_24 : f32 to vector<8x128xf32>
    %630 = arith.subf %629, %628 : vector<8x128xf32>
    %c0_25 = arith.constant 0 : index
    %c0_26 = arith.constant 0 : index
    %c0_27 = arith.constant 0 : index
    %631 = vector.load %arg3[%c0_25, %c0_26, %c0_27] : memref<2x8x128xf32, #tpu.memory_space<vmem>>, vector<1x8x128xf32>
    %632 = vector.shape_cast %631 : vector<1x8x128xf32> to vector<8x128xf32>
    %633 = vector.shape_cast %628 : vector<8x128xf32> to vector<1x8x128xf32>
    tpu.vector_store %arg3[%c0_25, %c0_26, %c0_27], %633 {strides = array<i32>} : memref<2x8x128xf32, #tpu.memory_space<vmem>>, vector<1x8x128xf32>,
    %c1_28 = arith.constant 1 : index
    %c0_29 = arith.constant 0 : index
    %c0_30 = arith.constant 0 : index
    %634 = vector.load %arg3[%c1_28, %c0_29, %c0_30] : memref<2x8x128xf32, #tpu.memory_space<vmem>>, vector<1x8x128xf32>
    %635 = vector.shape_cast %634 : vector<1x8x128xf32> to vector<8x128xf32>
    %636 = vector.shape_cast %630 : vector<8x128xf32> to vector<1x8x128xf32>
    tpu.vector_store %arg3[%c1_28, %c0_29, %c0_30], %636 {strides = array<i32>} : memref<2x8x128xf32, #tpu.memory_space<vmem>>, vector<1x8x128xf32>,
    return
  }
  func.func @transform_0(%arg0: i32) -> i32 {
    %c0_i32 = arith.constant 0 : i32
    %c0_i32_0 = arith.constant 0 : i32
    return %c0_i32 : i32
  }
  func.func @transform_1(%arg0: i32) -> (i32, i32, i32) {
    %c0_i32 = arith.constant 0 : i32
    %c0_i32_0 = arith.constant 0 : i32
    %c0_i32_1 = arith.constant 0 : i32
    return %c0_i32, %arg0, %c0_i32_0 : i32, i32, i32
  }
  func.func @transform_2(%arg0: i32) -> (i32, i32, i32) {
    %c0_i32 = arith.constant 0 : i32
    %c0_i32_0 = arith.constant 0 : i32
    %c0_i32_1 = arith.constant 0 : i32
    return %c0_i32, %arg0, %c0_i32_0 : i32, i32, i32
  }
}

</mosaic_0001>

<llo_original>
// kernel: tpu_custom_call.1
$region0: #{tpu_custom_call.1}
  #allocation0 [shape = 'u32[]', space=smem, size = 0x4, offset = 0x4, fixed_abs, tag = 'smem constant byte address 0x4 - core index']
  #allocation1 [shape = 'u32[144,128]{1,0:T(1,128)}', space=vmem, size = 0x12000, scoped, tag = 'internal scratch']
  %s0 = inlined_call_operand.hbm [shape: f32[156], index: 0, kind: input, shape index: {}]
  %s1 = inlined_call_operand.hbm [shape: f32[4,8,128], index: 1, kind: input, shape index: {}]
  %s2 = inlined_call_operand.hbm [shape: f32[2,8,128], index: 2, kind: output, shape index: {}]
  %s3 = sld [smem:[#allocation0]]
  $region26: #{tpu_custom_call.1} parent=0
    _
  %s5 = ssub.s32 1, %s3
  %s6 = scalar_select 0, %s5, %s3
  $region1: #{tpu_custom_call.1} parent=0
    #allocation2 [shape = 'u8[1024]{0}', space=smem, size = 0x400, scoped, tag = 'input window, operand 0, single buffered']
    #allocation3 [shape = 's32[1]{0}', space=sflag, size = 0x4, scoped, tag = 'scoped memory for tpu_custom_call.1']
    #allocation4 [shape = 's32[1]{0}', space=sflag, size = 0x4, scoped, tag = 'scoped memory for tpu_custom_call.1']
    #allocation5 [shape = 's32[1]{0}', space=sflag, size = 0x4, scoped, tag = 'scoped memory for tpu_custom_call.1']
    #allocation6 [shape = 'u8[16384]{0}', space=vmem, size = 0x4000, scoped, tag = 'input window, operand 1, single buffered']
    #allocation7 [shape = 'u8[8192]{0}', space=vmem, size = 0x2000, scoped, tag = 'output window, operand 0, single buffered']
    %7 = vsyncpa [#allocation5], 0
    %8 = vsyncpa [#allocation3], 0
    %9 = vsyncpa [#allocation4], 0
    // Predicated region
    $region2: #{tpu_custom_call.1} parent=1 // pred_check
      _
    $region3: #{tpu_custom_call.1} parent=1 // pred_check_branch
      %11 = sbr.rel (0) target = $region5
    $region4: #{tpu_custom_call.1} parent=1 // pred_region
      %s13 = ssub.s32 32, 32
      %14 = vsyncadd [#allocation5], %s13
      %17 = dma.hbm_to_smem %s0, 32, [#allocation2], [#allocation5]
    $region5: #{tpu_custom_call.1} parent=1 // pred_fallthru
      _
    // Predicated region
    $region6: #{tpu_custom_call.1} parent=1 // pred_check
      _
    $region7: #{tpu_custom_call.1} parent=1 // pred_check_branch
      %19 = sbr.rel (0) target = $region9
    $region8: #{tpu_custom_call.1} parent=1 // pred_region
      %s21 = ssub.s32 512, 512
      %22 = vsyncadd [#allocation3], %s21
      %s23 = sshll.u32 [#allocation6], 4
      %s24 = int_to_ptr.vmem [resolvable:$true] %s23
      %29 = dma.hbm_to_vmem [thread:$0]  %s1, 512, %s24, [#allocation3], 128, 128, 8
    $region9: #{tpu_custom_call.1} parent=1 // pred_fallthru
      _
    // Predicated region
    $region10: #{tpu_custom_call.1} parent=1 // pred_check
      _
    $region11: #{tpu_custom_call.1} parent=1 // pred_check_branch
      %31 = sbr.rel (0) target = $region13
    $region12: #{tpu_custom_call.1} parent=1 // pred_region
      %32 = dma.done [#allocation5], 32
    $region13: #{tpu_custom_call.1} parent=1 // pred_fallthru
      _
    // Predicated region
    $region14: #{tpu_custom_call.1} parent=1 // pred_check
      _
    $region15: #{tpu_custom_call.1} parent=1 // pred_check_branch
      %34 = sbr.rel (0) target = $region17
    $region16: #{tpu_custom_call.1} parent=1 // pred_region
      %35 = dma.done [#allocation3], 512
    $region17: #{tpu_custom_call.1} parent=1 // pred_fallthru
      _
    %36 = sfence
    %v37 = vld [vmem:[#allocation6] sm:$0xff]
    %s38 = scalar_lea.vmem [#allocation6], 8
    %v39 = vld [vmem:[%s38] sm:$0xff]
    %s40 = scalar_lea.vmem [#allocation6], 16
    %v41 = vld [vmem:[%s40] sm:$0xff]
    %s42 = scalar_lea.vmem [#allocation6], 24
    %v43 = vld [vmem:[%s42] sm:$0xff]
    %v44 = vmul.f32 %v37, %v37
    %v45 = vmul.f32 %v39, %v39
    %v46 = vmul.f32 %v41, %v41
    %v47 = vmul.f32 %v43, %v43
    %s48 = sld [smem:[#allocation2]]
    %v49 = vstv %s48
    %v50 = vmul.f32 %v37, %v49
    %s51 = sld [smem:[#allocation2 + $0xa]]
    %v52 = vstv %s51
    %v53 = vmul.f32 %v37, %v52
    %s54 = sld [smem:[#allocation2 + $0x14]]
    %v55 = vstv %s54
    %v56 = vmul.f32 %v44, %v55
    %s57 = sld [smem:[#allocation2 + $0x2]]
    %v58 = vstv %s57
    %v59 = vmul.f32 %v39, %v58
    %v60 = vadd.f32 %v50, %v59
    %s61 = sld [smem:[#allocation2 + $0xc]]
    %v62 = vstv %s61
    %v63 = vmul.f32 %v39, %v62
    %v64 = vadd.f32 %v53, %v63
    %s65 = sld [smem:[#allocation2 + $0x16]]
    %v66 = vstv %s65
    %v67 = vmul.f32 %v45, %v66
    %v68 = vadd.f32 %v56, %v67
    %s69 = sld [smem:[#allocation2 + $0x4]]
    %v70 = vstv %s69
    %v71 = vmul.f32 %v41, %v70
    %v72 = vadd.f32 %v60, %v71
    %s73 = sld [smem:[#allocation2 + $0xe]]
    %v74 = vstv %s73
    %v75 = vmul.f32 %v41, %v74
    %v76 = vadd.f32 %v64, %v75
    %s77 = sld [smem:[#allocation2 + $0x18]]
    %v78 = vstv %s77
    %v79 = vmul.f32 %v46, %v78
    %v80 = vadd.f32 %v68, %v79
    %s81 = sld [smem:[#allocation2 + $0x6]]
    %v82 = vstv %s81
    %v83 = vmul.f32 %v43, %v82
    %v84 = vadd.f32 %v72, %v83
    %s85 = sld [smem:[#allocation2 + $0x10]]
    %v86 = vstv %s85
    %v87 = vmul.f32 %v43, %v86
    %v88 = vadd.f32 %v76, %v87
    %s89 = sld [smem:[#allocation2 + $0x1a]]
    %v90 = vstv %s89
    %v91 = vmul.f32 %v47, %v90
    %v92 = vadd.f32 %v80, %v91
    %s93 = sld [smem:[#allocation2 + $0x8]]
    %v94 = vstv %s93
    %v95 = vadd.f32 %v84, %v94
    %s96 = sld [smem:[#allocation2 + $0x12]]
    %v97 = vstv %s96
    %v98 = vadd.f32 %v88, %v97
    %s99 = sld [smem:[#allocation2 + $0x1c]]
    %v100 = vstv %s99
    %v101 = vadd.f32 %v92, %v100
    %v102 = vmul.f32 %v95, %v98
    %v103 = vadd.f32 %v102, %v101
    %v104 = vmax.f32 %v103, 0.0
    %s105 = sld [smem:[#allocation2 + $0x1]]
    %v106 = vstv %s105
    %v107 = vmul.f32 %v37, %v106
    %s108 = sld [smem:[#allocation2 + $0xb]]
    %v109 = vstv %s108
    %v110 = vmul.f32 %v37, %v109
    %s111 = sld [smem:[#allocation2 + $0x15]]
    %v112 = vstv %s111
    %v113 = vmul.f32 %v44, %v112
    %s114 = sld [smem:[#allocation2 + $0x3]]
    %v115 = vstv %s114
    %v116 = vmul.f32 %v39, %v115
    %v117 = vadd.f32 %v107, %v116
    %s118 = sld [smem:[#allocation2 + $0xd]]
    %v119 = vstv %s118
    %v120 = vmul.f32 %v39, %v119
    %v121 = vadd.f32 %v110, %v120
    %s122 = sld [smem:[#allocation2 + $0x17]]
    %v123 = vstv %s122
    %v124 = vmul.f32 %v45, %v123
    %v125 = vadd.f32 %v113, %v124
    %s126 = sld [smem:[#allocation2 + $0x5]]
    %v127 = vstv %s126
    %v128 = vmul.f32 %v41, %v127
    %v129 = vadd.f32 %v117, %v128
    %s130 = sld [smem:[#allocation2 + $0xf]]
    %v131 = vstv %s130
    %v132 = vmul.f32 %v41, %v131
    %v133 = vadd.f32 %v121, %v132
    %s134 = sld [smem:[#allocation2 + $0x19]]
    %v135 = vstv %s134
    %v136 = vmul.f32 %v46, %v135
    %v137 = vadd.f32 %v125, %v136
    %s138 = sld [smem:[#allocation2 + $0x7]]
    %v139 = vstv %s138
    %v140 = vmul.f32 %v43, %v139
    %v141 = vadd.f32 %v129, %v140
    %s142 = sld [smem:[#allocation2 + $0x11]]
    %v143 = vstv %s142
    %v144 = vmul.f32 %v43, %v143
    %v145 = vadd.f32 %v133, %v144
    %s146 = sld [smem:[#allocation2 + $0x1b]]
    %v147 = vstv %s146
    %v148 = vmul.f32 %v47, %v147
    %v149 = vadd.f32 %v137, %v148
    %s150 = sld [smem:[#allocation2 + $0x9]]
    %v151 = vstv %s150
    %v152 = vadd.f32 %v141, %v151
    %s153 = sld [smem:[#allocation2 + $0x13]]
    %v154 = vstv %s153
    %v155 = vadd.f32 %v145, %v154
    %s156 = sld [smem:[#allocation2 + $0x1d]]
    %v157 = vstv %s156
    %v158 = vadd.f32 %v149, %v157
    %v159 = vmul.f32 %v152, %v155
    %v160 = vadd.f32 %v159, %v158
    %v161 = vmax.f32 %v160, 0.0
    %v162 = vmul.f32 %v104, %v104
    %v163 = vmul.f32 %v161, %v161
    %s164 = sld [smem:[#allocation2 + $0x1e]]
    %v165 = vstv %s164
    %v166 = vmul.f32 %v104, %v165
    %s167 = sld [smem:[#allocation2 + $0x2a]]
    %v168 = vstv %s167
    %v169 = vmul.f32 %v104, %v168
    %s170 = sld [smem:[#allocation2 + $0x36]]
    %v171 = vstv %s170
    %v172 = vmul.f32 %v162, %v171
    %s173 = sld [smem:[#allocation2 + $0x22]]
    %v174 = vstv %s173
    %v175 = vmul.f32 %v161, %v174
    %v176 = vadd.f32 %v166, %v175
    %s177 = sld [smem:[#allocation2 + $0x2e]]
    %v178 = vstv %s177
    %v179 = vmul.f32 %v161, %v178
    %v180 = vadd.f32 %v169, %v179
    %s181 = sld [smem:[#allocation2 + $0x3a]]
    %v182 = vstv %s181
    %v183 = vmul.f32 %v163, %v182
    %v184 = vadd.f32 %v172, %v183
    %s185 = sld [smem:[#allocation2 + $0x26]]
    %v186 = vstv %s185
    %v187 = vadd.f32 %v176, %v186
    %s188 = sld [smem:[#allocation2 + $0x32]]
    %v189 = vstv %s188
    %v190 = vadd.f32 %v180, %v189
    %s191 = sld [smem:[#allocation2 + $0x3e]]
    %v192 = vstv %s191
    %v193 = vadd.f32 %v184, %v192
    %v194 = vmul.f32 %v187, %v190
    %v195 = vadd.f32 %v194, %v193
    %v196 = vmax.f32 %v195, 0.0
    %s197 = sld [smem:[#allocation2 + $0x1f]]
    %v198 = vstv %s197
    %v199 = vmul.f32 %v104, %v198
    %s200 = sld [smem:[#allocation2 + $0x2b]]
    %v201 = vstv %s200
    %v202 = vmul.f32 %v104, %v201
    %s203 = sld [smem:[#allocation2 + $0x37]]
    %v204 = vstv %s203
    %v205 = vmul.f32 %v162, %v204
    %s206 = sld [smem:[#allocation2 + $0x23]]
    %v207 = vstv %s206
    %v208 = vmul.f32 %v161, %v207
    %v209 = vadd.f32 %v199, %v208
    %s210 = sld [smem:[#allocation2 + $0x2f]]
    %v211 = vstv %s210
    %v212 = vmul.f32 %v161, %v211
    %v213 = vadd.f32 %v202, %v212
    %s214 = sld [smem:[#allocation2 + $0x3b]]
    %v215 = vstv %s214
    %v216 = vmul.f32 %v163, %v215
    %v217 = vadd.f32 %v205, %v216
    %s218 = sld [smem:[#allocation2 + $0x27]]
    %v219 = vstv %s218
    %v220 = vadd.f32 %v209, %v219
    %s221 = sld [smem:[#allocation2 + $0x33]]
    %v222 = vstv %s221
    %v223 = vadd.f32 %v213, %v222
    %s224 = sld [smem:[#allocation2 + $0x3f]]
    %v225 = vstv %s224
    %v226 = vadd.f32 %v217, %v225
    %v227 = vmul.f32 %v220, %v223
    %v228 = vadd.f32 %v227, %v226
    %v229 = vmax.f32 %v228, 0.0
    %s230 = sld [smem:[#allocation2 + $0x20]]
    %v231 = vstv %s230
    %v232 = vmul.f32 %v104, %v231
    %s233 = sld [smem:[#allocation2 + $0x2c]]
    %v234 = vstv %s233
    %v235 = vmul.f32 %v104, %v234
    %s236 = sld [smem:[#allocation2 + $0x38]]
    %v237 = vstv %s236
    %v238 = vmul.f32 %v162, %v237
    %s239 = sld [smem:[#allocation2 + $0x24]]
    %v240 = vstv %s239
    %v241 = vmul.f32 %v161, %v240
    %v242 = vadd.f32 %v232, %v241
    %s243 = sld [smem:[#allocation2 + $0x30]]
    %v244 = vstv %s243
    %v245 = vmul.f32 %v161, %v244
    %v246 = vadd.f32 %v235, %v245
    %s247 = sld [smem:[#allocation2 + $0x3c]]
    %v248 = vstv %s247
    %v249 = vmul.f32 %v163, %v248
    %v250 = vadd.f32 %v238, %v249
    %s251 = sld [smem:[#allocation2 + $0x28]]
    %v252 = vstv %s251
    %v253 = vadd.f32 %v242, %v252
    %s254 = sld [smem:[#allocation2 + $0x34]]
    %v255 = vstv %s254
    %v256 = vadd.f32 %v246, %v255
    %s257 = sld [smem:[#allocation2 + $0x40]]
    %v258 = vstv %s257
    %v259 = vadd.f32 %v250, %v258
    %v260 = vmul.f32 %v253, %v256
    %v261 = vadd.f32 %v260, %v259
    %v262 = vmax.f32 %v261, 0.0
    %s263 = sld [smem:[#allocation2 + $0x21]]
    %v264 = vstv %s263
    %v265 = vmul.f32 %v104, %v264
    %s266 = sld [smem:[#allocation2 + $0x2d]]
    %v267 = vstv %s266
    %v268 = vmul.f32 %v104, %v267
    %s269 = sld [smem:[#allocation2 + $0x39]]
    %v270 = vstv %s269
    %v271 = vmul.f32 %v162, %v270
    %s272 = sld [smem:[#allocation2 + $0x25]]
    %v273 = vstv %s272
    %v274 = vmul.f32 %v161, %v273
    %v275 = vadd.f32 %v265, %v274
    %s276 = sld [smem:[#allocation2 + $0x31]]
    %v277 = vstv %s276
    %v278 = vmul.f32 %v161, %v277
    %v279 = vadd.f32 %v268, %v278
    %s280 = sld [smem:[#allocation2 + $0x3d]]
    %v281 = vstv %s280
    %v282 = vmul.f32 %v163, %v281
    %v283 = vadd.f32 %v271, %v282
    %s284 = sld [smem:[#allocation2 + $0x29]]
    %v285 = vstv %s284
    %v286 = vadd.f32 %v275, %v285
    %s287 = sld [smem:[#allocation2 + $0x35]]
    %v288 = vstv %s287
    %v289 = vadd.f32 %v279, %v288
    %s290 = sld [smem:[#allocation2 + $0x41]]
    %v291 = vstv %s290
    %v292 = vadd.f32 %v283, %v291
    %v293 = vmul.f32 %v286, %v289
    %v294 = vadd.f32 %v293, %v292
    %v295 = vmax.f32 %v294, 0.0
    %v296 = vmul.f32 %v196, %v196
    %v297 = vmul.f32 %v229, %v229
    %v298 = vmul.f32 %v262, %v262
    %v299 = vmul.f32 %v295, %v295
    %s300 = sld [smem:[#allocation2 + $0x42]]
    %v301 = vstv %s300
    %v302 = vmul.f32 %v196, %v301
    %s303 = sld [smem:[#allocation2 + $0x56]]
    %v304 = vstv %s303
    %v305 = vmul.f32 %v196, %v304
    %s306 = sld [smem:[#allocation2 + $0x6a]]
    %v307 = vstv %s306
    %v308 = vmul.f32 %v296, %v307
    %s309 = sld [smem:[#allocation2 + $0x46]]
    %v310 = vstv %s309
    %v311 = vmul.f32 %v229, %v310
    %v312 = vadd.f32 %v302, %v311
    %s313 = sld [smem:[#allocation2 + $0x5a]]
    %v314 = vstv %s313
    %v315 = vmul.f32 %v229, %v314
    %v316 = vadd.f32 %v305, %v315
    %s317 = sld [smem:[#allocation2 + $0x6e]]
    %v318 = vstv %s317
    %v319 = vmul.f32 %v297, %v318
    %v320 = vadd.f32 %v308, %v319
    %s321 = sld [smem:[#allocation2 + $0x4a]]
    %v322 = vstv %s321
    %v323 = vmul.f32 %v262, %v322
    %v324 = vadd.f32 %v312, %v323
    %s325 = sld [smem:[#allocation2 + $0x5e]]
    %v326 = vstv %s325
    %v327 = vmul.f32 %v262, %v326
    %v328 = vadd.f32 %v316, %v327
    %s329 = sld [smem:[#allocation2 + $0x72]]
    %v330 = vstv %s329
    %v331 = vmul.f32 %v298, %v330
    %v332 = vadd.f32 %v320, %v331
    %s333 = sld [smem:[#allocation2 + $0x4e]]
    %v334 = vstv %s333
    %v335 = vmul.f32 %v295, %v334
    %v336 = vadd.f32 %v324, %v335
    %s337 = sld [smem:[#allocation2 + $0x62]]
    %v338 = vstv %s337
    %v339 = vmul.f32 %v295, %v338
    %v340 = vadd.f32 %v328, %v339
    %s341 = sld [smem:[#allocation2 + $0x76]]
    %v342 = vstv %s341
    %v343 = vmul.f32 %v299, %v342
    %v344 = vadd.f32 %v332, %v343
    %s345 = sld [smem:[#allocation2 + $0x52]]
    %v346 = vstv %s345
    %v347 = vadd.f32 %v336, %v346
    %s348 = sld [smem:[#allocation2 + $0x66]]
    %v349 = vstv %s348
    %v350 = vadd.f32 %v340, %v349
    %s351 = sld [smem:[#allocation2 + $0x7a]]
    %v352 = vstv %s351
    %v353 = vadd.f32 %v344, %v352
    %v354 = vmul.f32 %v347, %v350
    %v355 = vadd.f32 %v354, %v353
    %v356 = vmax.f32 %v355, 0.0
    %s357 = sld [smem:[#allocation2 + $0x43]]
    %v358 = vstv %s357
    %v359 = vmul.f32 %v196, %v358
    %s360 = sld [smem:[#allocation2 + $0x57]]
    %v361 = vstv %s360
    %v362 = vmul.f32 %v196, %v361
    %s363 = sld [smem:[#allocation2 + $0x6b]]
    %v364 = vstv %s363
    %v365 = vmul.f32 %v296, %v364
    %s366 = sld [smem:[#allocation2 + $0x47]]
    %v367 = vstv %s366
    %v368 = vmul.f32 %v229, %v367
    %v369 = vadd.f32 %v359, %v368
    %s370 = sld [smem:[#allocation2 + $0x5b]]
    %v371 = vstv %s370
    %v372 = vmul.f32 %v229, %v371
    %v373 = vadd.f32 %v362, %v372
    %s374 = sld [smem:[#allocation2 + $0x6f]]
    %v375 = vstv %s374
    %v376 = vmul.f32 %v297, %v375
    %v377 = vadd.f32 %v365, %v376
    %s378 = sld [smem:[#allocation2 + $0x4b]]
    %v379 = vstv %s378
    %v380 = vmul.f32 %v262, %v379
    %v381 = vadd.f32 %v369, %v380
    %s382 = sld [smem:[#allocation2 + $0x5f]]
    %v383 = vstv %s382
    %v384 = vmul.f32 %v262, %v383
    %v385 = vadd.f32 %v373, %v384
    %s386 = sld [smem:[#allocation2 + $0x73]]
    %v387 = vstv %s386
    %v388 = vmul.f32 %v298, %v387
    %v389 = vadd.f32 %v377, %v388
    %s390 = sld [smem:[#allocation2 + $0x4f]]
    %v391 = vstv %s390
    %v392 = vmul.f32 %v295, %v391
    %v393 = vadd.f32 %v381, %v392
    %s394 = sld [smem:[#allocation2 + $0x63]]
    %v395 = vstv %s394
    %v396 = vmul.f32 %v295, %v395
    %v397 = vadd.f32 %v385, %v396
    %s398 = sld [smem:[#allocation2 + $0x77]]
    %v399 = vstv %s398
    %v400 = vmul.f32 %v299, %v399
    %v401 = vadd.f32 %v389, %v400
    %s402 = sld [smem:[#allocation2 + $0x53]]
    %v403 = vstv %s402
    %v404 = vadd.f32 %v393, %v403
    %s405 = sld [smem:[#allocation2 + $0x67]]
    %v406 = vstv %s405
    %v407 = vadd.f32 %v397, %v406
    %s408 = sld [smem:[#allocation2 + $0x7b]]
    %v409 = vstv %s408
    %v410 = vadd.f32 %v401, %v409
    %v411 = vmul.f32 %v404, %v407
    %v412 = vadd.f32 %v411, %v410
    %v413 = vmax.f32 %v412, 0.0
    %s414 = sld [smem:[#allocation2 + $0x44]]
    %v415 = vstv %s414
    %v416 = vmul.f32 %v196, %v415
    %s417 = sld [smem:[#allocation2 + $0x58]]
    %v418 = vstv %s417
    %v419 = vmul.f32 %v196, %v418
    %s420 = sld [smem:[#allocation2 + $0x6c]]
    %v421 = vstv %s420
    %v422 = vmul.f32 %v296, %v421
    %s423 = sld [smem:[#allocation2 + $0x48]]
    %v424 = vstv %s423
    %v425 = vmul.f32 %v229, %v424
    %v426 = vadd.f32 %v416, %v425
    %s427 = sld [smem:[#allocation2 + $0x5c]]
    %v428 = vstv %s427
    %v429 = vmul.f32 %v229, %v428
    %v430 = vadd.f32 %v419, %v429
    %s431 = sld [smem:[#allocation2 + $0x70]]
    %v432 = vstv %s431
    %v433 = vmul.f32 %v297, %v432
    %v434 = vadd.f32 %v422, %v433
    %s435 = sld [smem:[#allocation2 + $0x4c]]
    %v436 = vstv %s435
    %v437 = vmul.f32 %v262, %v436
    %v438 = vadd.f32 %v426, %v437
    %s439 = sld [smem:[#allocation2 + $0x60]]
    %v440 = vstv %s439
    %v441 = vmul.f32 %v262, %v440
    %v442 = vadd.f32 %v430, %v441
    %s443 = sld [smem:[#allocation2 + $0x74]]
    %v444 = vstv %s443
    %v445 = vmul.f32 %v298, %v444
    %v446 = vadd.f32 %v434, %v445
    %s447 = sld [smem:[#allocation2 + $0x50]]
    %v448 = vstv %s447
    %v449 = vmul.f32 %v295, %v448
    %v450 = vadd.f32 %v438, %v449
    %s451 = sld [smem:[#allocation2 + $0x64]]
    %v452 = vstv %s451
    %v453 = vmul.f32 %v295, %v452
    %v454 = vadd.f32 %v442, %v453
    %s455 = sld [smem:[#allocation2 + $0x78]]
    %v456 = vstv %s455
    %v457 = vmul.f32 %v299, %v456
    %v458 = vadd.f32 %v446, %v457
    %s459 = sld [smem:[#allocation2 + $0x54]]
    %v460 = vstv %s459
    %v461 = vadd.f32 %v450, %v460
    %s462 = sld [smem:[#allocation2 + $0x68]]
    %v463 = vstv %s462
    %v464 = vadd.f32 %v454, %v463
    %s465 = sld [smem:[#allocation2 + $0x7c]]
    %v466 = vstv %s465
    %v467 = vadd.f32 %v458, %v466
    %v468 = vmul.f32 %v461, %v464
    %v469 = vadd.f32 %v468, %v467
    %v470 = vmax.f32 %v469, 0.0
    %s471 = sld [smem:[#allocation2 + $0x45]]
    %v472 = vstv %s471
    %v473 = vmul.f32 %v196, %v472
    %s474 = sld [smem:[#allocation2 + $0x59]]
    %v475 = vstv %s474
    %v476 = vmul.f32 %v196, %v475
    %s477 = sld [smem:[#allocation2 + $0x6d]]
    %v478 = vstv %s477
    %v479 = vmul.f32 %v296, %v478
    %s480 = sld [smem:[#allocation2 + $0x49]]
    %v481 = vstv %s480
    %v482 = vmul.f32 %v229, %v481
    %v483 = vadd.f32 %v473, %v482
    %s484 = sld [smem:[#allocation2 + $0x5d]]
    %v485 = vstv %s484
    %v486 = vmul.f32 %v229, %v485
    %v487 = vadd.f32 %v476, %v486
    %s488 = sld [smem:[#allocation2 + $0x71]]
    %v489 = vstv %s488
    %v490 = vmul.f32 %v297, %v489
    %v491 = vadd.f32 %v479, %v490
    %s492 = sld [smem:[#allocation2 + $0x4d]]
    %v493 = vstv %s492
    %v494 = vmul.f32 %v262, %v493
    %v495 = vadd.f32 %v483, %v494
    %s496 = sld [smem:[#allocation2 + $0x61]]
    %v497 = vstv %s496
    %v498 = vmul.f32 %v262, %v497
    %v499 = vadd.f32 %v487, %v498
    %s500 = sld [smem:[#allocation2 + $0x75]]
    %v501 = vstv %s500
    %v502 = vmul.f32 %v298, %v501
    %v503 = vadd.f32 %v491, %v502
    %s504 = sld [smem:[#allocation2 + $0x51]]
    %v505 = vstv %s504
    %v506 = vmul.f32 %v295, %v505
    %v507 = vadd.f32 %v495, %v506
    %s508 = sld [smem:[#allocation2 + $0x65]]
    %v509 = vstv %s508
    %v510 = vmul.f32 %v295, %v509
    %v511 = vadd.f32 %v499, %v510
    %s512 = sld [smem:[#allocation2 + $0x79]]
    %v513 = vstv %s512
    %v514 = vmul.f32 %v299, %v513
    %v515 = vadd.f32 %v503, %v514
    %s516 = sld [smem:[#allocation2 + $0x55]]
    %v517 = vstv %s516
    %v518 = vadd.f32 %v507, %v517
    %s519 = sld [smem:[#allocation2 + $0x69]]
    %v520 = vstv %s519
    %v521 = vadd.f32 %v511, %v520
    %s522 = sld [smem:[#allocation2 + $0x7d]]
    %v523 = vstv %s522
    %v524 = vadd.f32 %v515, %v523
    %v525 = vmul.f32 %v518, %v521
    %v526 = vadd.f32 %v525, %v524
    %v527 = vmax.f32 %v526, 0.0
    %v528 = vmul.f32 %v356, %v356
    %v529 = vmul.f32 %v413, %v413
    %v530 = vmul.f32 %v470, %v470
    %v531 = vmul.f32 %v527, %v527
    %s532 = sld [smem:[#allocation2 + $0x7e]]
    %v533 = vstv %s532
    %v534 = vmul.f32 %v356, %v533
    %s535 = sld [smem:[#allocation2 + $0x88]]
    %v536 = vstv %s535
    %v537 = vmul.f32 %v356, %v536
    %s538 = sld [smem:[#allocation2 + $0x92]]
    %v539 = vstv %s538
    %v540 = vmul.f32 %v528, %v539
    %s541 = sld [smem:[#allocation2 + $0x80]]
    %v542 = vstv %s541
    %v543 = vmul.f32 %v413, %v542
    %v544 = vadd.f32 %v534, %v543
    %s545 = sld [smem:[#allocation2 + $0x8a]]
    %v546 = vstv %s545
    %v547 = vmul.f32 %v413, %v546
    %v548 = vadd.f32 %v537, %v547
    %s549 = sld [smem:[#allocation2 + $0x94]]
    %v550 = vstv %s549
    %v551 = vmul.f32 %v529, %v550
    %v552 = vadd.f32 %v540, %v551
    %s553 = sld [smem:[#allocation2 + $0x82]]
    %v554 = vstv %s553
    %v555 = vmul.f32 %v470, %v554
    %v556 = vadd.f32 %v544, %v555
    %s557 = sld [smem:[#allocation2 + $0x8c]]
    %v558 = vstv %s557
    %v559 = vmul.f32 %v470, %v558
    %v560 = vadd.f32 %v548, %v559
    %s561 = sld [smem:[#allocation2 + $0x96]]
    %v562 = vstv %s561
    %v563 = vmul.f32 %v530, %v562
    %v564 = vadd.f32 %v552, %v563
    %s565 = sld [smem:[#allocation2 + $0x84]]
    %v566 = vstv %s565
    %v567 = vmul.f32 %v527, %v566
    %v568 = vadd.f32 %v556, %v567
    %s569 = sld [smem:[#allocation2 + $0x8e]]
    %v570 = vstv %s569
    %v571 = vmul.f32 %v527, %v570
    %v572 = vadd.f32 %v560, %v571
    %s573 = sld [smem:[#allocation2 + $0x98]]
    %v574 = vstv %s573
    %v575 = vmul.f32 %v531, %v574
    %v576 = vadd.f32 %v564, %v575
    %s577 = sld [smem:[#allocation2 + $0x86]]
    %v578 = vstv %s577
    %v579 = vadd.f32 %v568, %v578
    %s580 = sld [smem:[#allocation2 + $0x90]]
    %v581 = vstv %s580
    %v582 = vadd.f32 %v572, %v581
    %s583 = sld [smem:[#allocation2 + $0x9a]]
    %v584 = vstv %s583
    %v585 = vadd.f32 %v576, %v584
    %v586 = vmul.f32 %v579, %v582
    %v587 = vadd.f32 %v586, %v585
    %s588 = sld [smem:[#allocation2 + $0x7f]]
    %v589 = vstv %s588
    %v590 = vmul.f32 %v356, %v589
    %s591 = sld [smem:[#allocation2 + $0x89]]
    %v592 = vstv %s591
    %v593 = vmul.f32 %v356, %v592
    %s594 = sld [smem:[#allocation2 + $0x93]]
    %v595 = vstv %s594
    %v596 = vmul.f32 %v528, %v595
    %s597 = sld [smem:[#allocation2 + $0x81]]
    %v598 = vstv %s597
    %v599 = vmul.f32 %v413, %v598
    %v600 = vadd.f32 %v590, %v599
    %s601 = sld [smem:[#allocation2 + $0x8b]]
    %v602 = vstv %s601
    %v603 = vmul.f32 %v413, %v602
    %v604 = vadd.f32 %v593, %v603
    %s605 = sld [smem:[#allocation2 + $0x95]]
    %v606 = vstv %s605
    %v607 = vmul.f32 %v529, %v606
    %v608 = vadd.f32 %v596, %v607
    %s609 = sld [smem:[#allocation2 + $0x83]]
    %v610 = vstv %s609
    %v611 = vmul.f32 %v470, %v610
    %v612 = vadd.f32 %v600, %v611
    %s613 = sld [smem:[#allocation2 + $0x8d]]
    %v614 = vstv %s613
    %v615 = vmul.f32 %v470, %v614
    %v616 = vadd.f32 %v604, %v615
    %s617 = sld [smem:[#allocation2 + $0x97]]
    %v618 = vstv %s617
    %v619 = vmul.f32 %v530, %v618
    %v620 = vadd.f32 %v608, %v619
    %s621 = sld [smem:[#allocation2 + $0x85]]
    %v622 = vstv %s621
    %v623 = vmul.f32 %v527, %v622
    %v624 = vadd.f32 %v612, %v623
    %s625 = sld [smem:[#allocation2 + $0x8f]]
    %v626 = vstv %s625
    %v627 = vmul.f32 %v527, %v626
    %v628 = vadd.f32 %v616, %v627
    %s629 = sld [smem:[#allocation2 + $0x99]]
    %v630 = vstv %s629
    %v631 = vmul.f32 %v531, %v630
    %v632 = vadd.f32 %v620, %v631
    %s633 = sld [smem:[#allocation2 + $0x87]]
    %v634 = vstv %s633
    %v635 = vadd.f32 %v624, %v634
    %s636 = sld [smem:[#allocation2 + $0x91]]
    %v637 = vstv %s636
    %v638 = vadd.f32 %v628, %v637
    %s639 = sld [smem:[#allocation2 + $0x9b]]
    %v640 = vstv %s639
    %v641 = vadd.f32 %v632, %v640
    %v642 = vmul.f32 %v635, %v638
    %v643 = vadd.f32 %v642, %v641
    %v644 = vsub.f32 %v643, %v587
    %v645 = vmin.f32 %v644, 80.0
    %v646 = vmul.f32 %v645, 1.442695
    %v647 = vpow.pop %v646
    %v648 = vadd.f32 %v647, 1.0
    %v649 = vrcp.pop %v648
    %v650 = vmul.f32 %v648, %v649
    %v651 = vsub.f32 2.0, %v650
    %v652 = vmul.f32 %v649, %v651
    %v653 = vsub.f32 1.0, %v652
    %654 = vst [vmem:[#allocation7] sm:$0xff] %v652
    %s655 = scalar_lea.vmem [#allocation7], 8
    %656 = vst [vmem:[%s655] sm:$0xff] %v653
    // Predicated region
    $region18: #{tpu_custom_call.1} parent=1 // pred_check
      _
    $region19: #{tpu_custom_call.1} parent=1 // pred_check_branch
      %658 = sbr.rel (0) target = $region21
    $region20: #{tpu_custom_call.1} parent=1 // pred_region
      %s660 = ssub.s32 256, 256
      %661 = vsyncadd [#allocation4], %s660
      %s662 = sshll.u32 [#allocation7], 4
      %s663 = int_to_ptr.vmem [resolvable:$true] %s662
      %668 = dma.vmem_to_hbm [thread:$0]  %s663, 256, %s2, [#allocation4], 128, 128, 8
    $region21: #{tpu_custom_call.1} parent=1 // pred_fallthru
      _
    // Predicated region
    $region22: #{tpu_custom_call.1} parent=1 // pred_check
      _
    $region23: #{tpu_custom_call.1} parent=1 // pred_check_branch
      %670 = sbr.rel (0) target = $region25
    $region24: #{tpu_custom_call.1} parent=1 // pred_region
      %671 = dma.done [#allocation4], 256
    $region25: #{tpu_custom_call.1} parent=1 // pred_fallthru
      _
    %672 = vsyncpa [#allocation3], 1
    %673 = vsyncpa [#allocation4], 1
    %674 = vsyncpa [#allocation5], 1

</llo_original>
